<compile_context>
chip_gen: v7x
topology: tpu7x:2x2x1
jax: 0.10.0
libtpu: 0.0.40
codegen_flags: <defaults>
</compile_context>

<pallas_src>
import functools

import jax
import jax.numpy as jnp
from jax.experimental import pallas as pl
from jax.experimental.pallas import tpu as pltpu

MXU_DTYPE = jnp.bfloat16      # matmul operand dtype; accumulation is always f32
LANE = 128                    # gate / output lane-padding quantum


def _round_up(x, m):
    return ((x + m - 1) // m) * m


# ----------------------------------------------------------------------------
# Fused forward kernel: one grid step == one chunk of Bc users.
# ----------------------------------------------------------------------------
def fused_forward_kernel(x_ref, conv_w_ref, conv_b_ref, *refs,
                         K, P, num_gru_layers):
    # x_ref:      (N, Bc, L+2*pad, D) f32   time-major, halo already applied
    # conv_w_ref: (K, D, C)           bf16  conv_w[k, d, c] == torch w[c, d, k]
    # conv_b_ref: (1, C)              f32
    # per GRU layer: w_ih (I, 3*HP) bf16, b_ih (1, 3*HP) f32,
    #                w_hh (HP, 3*HP) bf16, b_hh (1, 3*HP) f32
    #   (gate g = r|z|n occupies lanes [g*HP : g*HP+H]; padding lanes/rows = 0)
    # head: w1 (HP, inter) bf16, b1 (1, inter) f32, w2 (inter, O_pad) bf16,
    #       b2 (1, O_pad) f32
    # o_ref: (Bc, O_pad) f32
    n_gru = 4 * num_gru_layers
    gru_refs = refs[:n_gru]
    w1_ref, b1_ref, w2_ref, b2_ref, o_ref = refs[n_gru:]

    N, Bc, L_pad, D = x_ref.shape
    C = conv_w_ref.shape[2]
    L_out = L_pad - K + 1
    bin_sz = L_out // P
    NB = N * Bc
    R = NB * L_out
    HP = w1_ref.shape[0]          # 128-padded hidden width
    f32 = jnp.float32

    x = x_ref[...]                # (N, Bc, L_pad, D) f32
    conv_w = conv_w_ref[...]      # (K, D, C) bf16

    # ---- Conv1d ('same') as K accumulated MXU matmuls over all Bc*N orders --
    # No im2col scratch, no masked tap stores: each tap is a value slice of the
    # wrapper-padded input, reshaped once to (rows, D).
    acc = None
    for k in range(K):                                        # K static taps
        xk = x[:, :, k:k + L_out, :].reshape(R, D).astype(MXU_DTYPE)
        yk = jnp.dot(xk, conv_w[k], preferred_element_type=f32)   # (R, C)
        acc = yk if acc is None else acc + yk
    acc = jnp.maximum(acc + conv_b_ref[...], 0.0)             # bias + ReLU
    acc3 = acc.reshape(NB, L_out, C)                          # rows = t*Bc + u

    h = None
    seq = None
    for layer in range(num_gru_layers):
        w_ih_ref, b_ih_ref, w_hh_ref, b_hh_ref = gru_refs[4 * layer:4 * layer + 4]
        w_ih = w_ih_ref[...]
        w_hh = w_hh_ref[...]
        b_hh = b_hh_ref[...]

        # ---- input projection for ALL timesteps, hoisted off the recurrence -
        if layer == 0:
            # AdaptiveMaxPool1d (equal bins) fused into the projection:
            # gates_x = sum_p pooled_p @ W_ih[p*C:(p+1)*C]; the pooled (NB, C)
            # blocks stay in vregs, no scratch store / lane flatten needed.
            gx_all = None
            for p in range(P):
                pooled = jnp.max(acc3[:, p * bin_sz:(p + 1) * bin_sz, :], axis=1)
                gp = jnp.dot(pooled.astype(MXU_DTYPE),
                             w_ih[p * C:(p + 1) * C, :],
                             preferred_element_type=f32)
                gx_all = gp if gx_all is None else gx_all + gp
        else:
            gx_all = jnp.dot(seq.astype(MXU_DTYPE), w_ih,
                             preferred_element_type=f32)
        gx_all = gx_all + b_ih_ref[...]                       # (NB, 3*HP)

        # ---- serial recurrence: only h @ W_hh + gate elementwise per step ---
        h = jnp.zeros((Bc, HP), f32)
        outs = []
        for t in range(N):     # static unroll; N is small and trace-static
            # TODO(synk): for large N / many layers switch to
            # lax.fori_loop(unroll=True) + a VMEM seq scratch to bound live
            # ranges instead of Python unrolling and jnp.concatenate.
            gh = jnp.dot(h.astype(MXU_DTYPE), w_hh,
                         preferred_element_type=f32) + b_hh   # (Bc, 3*HP)
            gx = gx_all[t * Bc:(t + 1) * Bc, :]               # (Bc, 3*HP)
            # 128-lane-aligned gate slices (r | z | n).
            r = jax.nn.sigmoid(gx[:, 0:HP] + gh[:, 0:HP])
            z = jax.nn.sigmoid(gx[:, HP:2 * HP] + gh[:, HP:2 * HP])
            cand = jnp.tanh(gx[:, 2 * HP:] + r * gh[:, 2 * HP:])
            h = (1.0 - z) * cand + z * h                      # padding lanes stay 0
            if layer + 1 < num_gru_layers:
                outs.append(h)
        if layer + 1 < num_gru_layers:
            # nn.GRU inter-layer dropout is identity in eval mode.
            seq = jnp.concatenate(outs, axis=0)               # (NB, HP), time-major

    # ---- Prediction head: Linear -> ReLU -> (Dropout=identity) -> Linear ----
    z1 = jnp.maximum(jnp.dot(h.astype(MXU_DTYPE), w1_ref[...],
                             preferred_element_type=f32) + b1_ref[...], 0.0)
    # Lane-dense (Bc, O_pad) output store (O padded to 128 in the weights).
    o_ref[...] = jnp.dot(z1.astype(MXU_DTYPE), w2_ref[...],
                         preferred_element_type=f32) + b2_ref[...]


# ----------------------------------------------------------------------------
# Wrapper: one fused pallas_call over batch chunks.
# ----------------------------------------------------------------------------
def cnn_predictor_forward(product_x, params, *, cnn_kernel_size, pool_outsize,
                          num_outputs):
    B, N, L, D = product_x.shape
    K, P = cnn_kernel_size, pool_outsize
    pad = (K - 1) // 2
    L_out = L + 2 * pad - K + 1
    # TODO(synk): PyTorch's uneven (floor/ceil) AdaptiveMaxPool1d bins are not
    # implemented; only the equal-bin case L_out % P == 0 is supported.
    assert L_out % P == 0, "equal adaptive-pool bins assumed"

    conv_w, conv_b = params["conv_w"], params["conv_b"]
    gru = params["gru"]
    w1, b1 = params["head_w1"], params["head_b1"]
    w2, b2 = params["head_w2"], params["head_b2"]
    O_pad = w2.shape[1]

    # Batch users per grid step so every matmul carries many MXU rows and the
    # serial GRU chain is amortized.  256 targets the v6e/v7x MXU tile; the
    # per-step resident set stays far below the scoped-VMEM default at these
    # sizes (raise vmem_limit_bytes when scaling Bc / num_total_products up).
    Bc = min(B, 256)
    n_chunks = pl.cdiv(B, Bc)
    B_pad = n_chunks * Bc

    # Wrapper-side layout plumbing (cheap XLA, once per call):
    #  * time-major (N, B, L, D) so each GRU timestep is a contiguous Bc-row
    #    slice of the hoisted gates_x,
    #  * zero halo along L implements Conv1d's 'same' padding with no
    #    in-kernel zero-fill or masked stores.
    # x stays f32 so the in-kernel per-tap sublane slices act on an unpacked
    # dtype; the bf16 cast happens on the sliced MXU operand in the kernel.
    x_t = jnp.transpose(product_x, (1, 0, 2, 3))
    x_t = jnp.pad(x_t, ((0, 0), (0, B_pad - B), (pad, pad), (0, 0)))

    def full_block(a):
        nd = a.ndim
        return pl.BlockSpec(a.shape, lambda i, _nd=nd: (0,) * _nd)

    inputs = [x_t, conv_w, conv_b]
    in_specs = [
        pl.BlockSpec((N, Bc, L + 2 * pad, D), lambda i: (0, i, 0, 0)),
        full_block(conv_w),
        full_block(conv_b),
    ]
    for layer_params in gru:
        for a in layer_params:
            inputs.append(a)
            in_specs.append(full_block(a))
    # TODO(synk): for production-scale num_total_products, tile head_w2 over an
    # extra output grid axis instead of keeping it fully resident per core.
    for a in (w1, b1, w2, b2):
        inputs.append(a)
        in_specs.append(full_block(a))

    kernel = functools.partial(fused_forward_kernel, K=K, P=P,
                               num_gru_layers=len(gru))

    out = pl.pallas_call(
        kernel,
        out_shape=jax.ShapeDtypeStruct((B_pad, O_pad), jnp.float32),
        grid=(n_chunks,),
        in_specs=in_specs,
        out_specs=pl.BlockSpec((Bc, O_pad), lambda i: (i, 0)),
        compiler_params=pltpu.CompilerParams(
            # Batch chunks are independent: shards across the two TensorCores
            # on v7x, plain sequential loop on v5e/v6e.
            dimension_semantics=("parallel",)),
    )(*inputs)
    return out[:B, :num_outputs]


# ----------------------------------------------------------------------------
# Parameters: PyTorch-layout (for the pure-JAX reference) + kernel layout.
# ----------------------------------------------------------------------------
def make_params(key, *, product_emb_dim, cnn_out_channels, cnn_kernel_size,
                gru_hidden_dim, gru_layers, prediction_head_inter_dim,
                num_total_products, pool_outsize):
    D, C, K = product_emb_dim, cnn_out_channels, cnn_kernel_size
    H, P = gru_hidden_dim, pool_outsize
    inter, O = prediction_head_inter_dim, num_total_products
    I0 = C * P
    HP = _round_up(H, LANE)
    OP = _round_up(O, LANE)

    def unif(k, shape, bound):
        w = jax.random.uniform(k, shape, jnp.float32, -bound, bound)
        # Round through bf16 so the f32 reference and bf16 kernel weights hold
        # identical values.
        return w.astype(jnp.bfloat16).astype(jnp.float32)

    keys = iter(jax.random.split(key, 2 + 4 * gru_layers + 4))

    # -------- PyTorch-layout parameters (reference) --------------------------
    tp = {}
    cb = 1.0 / (D * K) ** 0.5
    tp["conv_w"] = unif(next(keys), (C, D, K), cb)         # Conv1d.weight
    tp["conv_b"] = unif(next(keys), (C,), cb)
    gb = 1.0 / H ** 0.5
    tp["gru"] = []
    for layer in range(gru_layers):
        I = I0 if layer == 0 else H
        w_ih = unif(next(keys), (3 * H, I), gb)            # rows: r | z | n
        w_hh = unif(next(keys), (3 * H, H), gb)
        b_ih = unif(next(keys), (3 * H,), gb)
        b_hh = unif(next(keys), (3 * H,), gb)
        tp["gru"].append((w_ih, w_hh, b_ih, b_hh))
    tp["head_w1"] = unif(next(keys), (inter, H), gb)
    tp["head_b1"] = unif(next(keys), (inter,), gb)
    hb2 = 1.0 / inter ** 0.5
    tp["head_w2"] = unif(next(keys), (O, inter), hb2)
    tp["head_b2"] = unif(next(keys), (O,), hb2)

    # -------- kernel-layout packing ------------------------------------------
    kp = {
        "conv_w": jnp.transpose(tp["conv_w"], (2, 1, 0)).astype(MXU_DTYPE),
        "conv_b": tp["conv_b"].reshape(1, C),
    }
    # Layer-0 feature order: kernel uses p*C + c, PyTorch flatten uses c*P + p.
    perm = jnp.asarray([c * P + p for p in range(P) for c in range(C)], jnp.int32)

    kp["gru"] = []
    for layer, (w_ih, w_hh, b_ih, b_hh) in enumerate(tp["gru"]):
        I = w_ih.shape[1]
        rows = I if layer == 0 else HP
        w_ih_k = jnp.zeros((rows, 3 * HP), jnp.float32)
        w_hh_k = jnp.zeros((HP, 3 * HP), jnp.float32)
        b_ih_k = jnp.zeros((1, 3 * HP), jnp.float32)
        b_hh_k = jnp.zeros((1, 3 * HP), jnp.float32)
        w_ih_T = w_ih.T                                    # (I, 3H)
        if layer == 0:
            w_ih_T = w_ih_T[perm]                          # apply the permutation
        for g in range(3):                                 # r | z | n -> own 128-lane block
            w_ih_k = w_ih_k.at[:I, g * HP:g * HP + H].set(w_ih_T[:, g * H:(g + 1) * H])
            w_hh_k = w_hh_k.at[:H, g * HP:g * HP + H].set(w_hh.T[:, g * H:(g + 1) * H])
            b_ih_k = b_ih_k.at[0, g * HP:g * HP + H].set(b_ih[g * H:(g + 1) * H])
            b_hh_k = b_hh_k.at[0, g * HP:g * HP + H].set(b_hh[g * H:(g + 1) * H])
        kp["gru"].append((w_ih_k.astype(MXU_DTYPE), b_ih_k,
                          w_hh_k.astype(MXU_DTYPE), b_hh_k))

    w1k = jnp.zeros((HP, inter), jnp.float32).at[:H, :].set(tp["head_w1"].T)
    w2k = jnp.zeros((inter, OP), jnp.float32).at[:, :O].set(tp["head_w2"].T)
    kp["head_w1"] = w1k.astype(MXU_DTYPE)
    kp["head_b1"] = tp["head_b1"].reshape(1, inter)
    kp["head_w2"] = w2k.astype(MXU_DTYPE)
    kp["head_b2"] = jnp.zeros((1, OP), jnp.float32).at[0, :O].set(tp["head_b2"])
    return tp, kp


# ----------------------------------------------------------------------------
# Pure-JAX reference of the PyTorch forward (f32, eval mode).
# ----------------------------------------------------------------------------
def reference_forward(product_x, tparams, *, cnn_kernel_size, pool_outsize):
    B, N, L, D = product_x.shape
    K, P = cnn_kernel_size, pool_outsize
    pad = (K - 1) // 2
    L_out = L + 2 * pad - K + 1
    conv_w, conv_b = tparams["conv_w"], tparams["conv_b"]      # (C, D, K), (C,)
    C = conv_w.shape[0]
    H = tparams["gru"][0][1].shape[1]                          # w_hh: (3H, H)

    x = product_x.reshape(B * N, L, D)
    xp = jnp.pad(x, ((0, 0), (pad, pad), (0, 0)))
    y = None
    for k in range(K):
        t = jnp.einsum("bld,cd->blc", xp[:, k:k + L_out, :], conv_w[:, :, k])
        y = t if y is None else y + t
    y = jax.nn.relu(y + conv_b[None, None, :])                 # (BN, L_out, C)

    pooled = y.reshape(B * N, P, L_out // P, C).max(axis=2)    # (BN, P, C)
    enc = jnp.transpose(pooled, (0, 2, 1)).reshape(B, N, C * P)  # flatten: c*P + p

    seq = enc
    h = jnp.zeros((B, H), jnp.float32)
    for (w_ih, w_hh, b_ih, b_hh) in tparams["gru"]:
        h = jnp.zeros((B, H), jnp.float32)
        hs = []
        for t in range(N):
            gi = seq[:, t, :] @ w_ih.T + b_ih
            gh = h @ w_hh.T + b_hh
            r = jax.nn.sigmoid(gi[:, :H] + gh[:, :H])
            z = jax.nn.sigmoid(gi[:, H:2 * H] + gh[:, H:2 * H])
            cand = jnp.tanh(gi[:, 2 * H:] + r * gh[:, 2 * H:])
            h = (1.0 - z) * cand + z * h
            hs.append(h)
        seq = jnp.stack(hs, axis=1)
    z1 = jax.nn.relu(h @ tparams["head_w1"].T + tparams["head_b1"])
    return z1 @ tparams["head_w2"].T + tparams["head_b2"]


if __name__ == "__main__":
    # Module hyper-parameters (small, consistent with the forward pass).
    num_total_products = 64
    product_emb_dim = 16
    cnn_out_channels = 32
    cnn_kernel_size = 3
    gru_hidden_dim = 32
    gru_layers = 1
    dropout_rate = 0.1            # eval-mode: dropout layers are identity
    prediction_head_inter_dim = 64
    pool_outsize = 4              # C * P = 128 -> lane-dense layer-0 GRU input

    B, N, L = 2, 4, 8             # batch, orders-per-user, items-per-order

    key = jax.random.PRNGKey(0)
    k_params, k_x = jax.random.split(key)

    torch_params, kernel_params = make_params(
        k_params,
        product_emb_dim=product_emb_dim,
        cnn_out_channels=cnn_out_channels,
        cnn_kernel_size=cnn_kernel_size,
        gru_hidden_dim=gru_hidden_dim,
        gru_layers=gru_layers,
        prediction_head_inter_dim=prediction_head_inter_dim,
        num_total_products=num_total_products,
        pool_outsize=pool_outsize,
    )

    product_x = jax.random.normal(k_x, (B, N, L, product_emb_dim), jnp.float32)

    fwd = jax.jit(functools.partial(
        cnn_predictor_forward,
        cnn_kernel_size=cnn_kernel_size,
        pool_outsize=pool_outsize,
        num_outputs=num_total_products))

    out = jax.block_until_ready(fwd(product_x, kernel_params))

    assert out.shape == (B, num_total_products), out.shape
    assert out.dtype == jnp.float32
    assert bool(jnp.all(jnp.isfinite(out)))

    # Tolerance-asserted pure-JAX reference of the PyTorch forward
    # (bf16 MXU operands => small deviation from the f32 reference).
    ref = reference_forward(product_x, torch_params,
                            cnn_kernel_size=cnn_kernel_size,
                            pool_outsize=pool_outsize)
    err = float(jnp.max(jnp.abs(out - ref)))
    assert err < 5e-2, f"kernel vs reference max abs err = {err}"

    print("KERNEL_OK")
</pallas_src>

<mosaic_0001>
module attributes {stable_mosaic.version = 11 : i64} {
  func.func @fused_forward_kernel(%arg0: i32, %arg1: memref<4x2x10x16xf32, #tpu.memory_space<vmem>>, %arg2: memref<3x16x32xbf16, #tpu.memory_space<vmem>>, %arg3: memref<1x32xf32, #tpu.memory_space<vmem>>, %arg4: memref<128x384xbf16, #tpu.memory_space<vmem>>, %arg5: memref<1x384xf32, #tpu.memory_space<vmem>>, %arg6: memref<128x384xbf16, #tpu.memory_space<vmem>>, %arg7: memref<1x384xf32, #tpu.memory_space<vmem>>, %arg8: memref<128x64xbf16, #tpu.memory_space<vmem>>, %arg9: memref<1x64xf32, #tpu.memory_space<vmem>>, %arg10: memref<64x128xbf16, #tpu.memory_space<vmem>>, %arg11: memref<1x128xf32, #tpu.memory_space<vmem>>, %arg12: memref<2x128xf32, #tpu.memory_space<vmem>>) attributes {dimension_semantics = [#tpu.dimension_semantics<parallel>], iteration_bounds = array<i64: 1>, scalar_prefetch = 0 : i64, scratch_operands = 0 : i64, tpu.core_type = #tpu.core_type<tc>, window_params = [{transform_indices = @transform_0, window_bounds = array<i64: 4, 2, 10, 16>}, {pipeline_mode = #tpu.pipeline_mode<synchronous>, transform_indices = @transform_1, window_bounds = array<i64: 3, 16, 32>}, {pipeline_mode = #tpu.pipeline_mode<synchronous>, transform_indices = @transform_2, window_bounds = array<i64: 1, 32>}, {pipeline_mode = #tpu.pipeline_mode<synchronous>, transform_indices = @transform_3, window_bounds = array<i64: 128, 384>}, {pipeline_mode = #tpu.pipeline_mode<synchronous>, transform_indices = @transform_4, window_bounds = array<i64: 1, 384>}, {pipeline_mode = #tpu.pipeline_mode<synchronous>, transform_indices = @transform_5, window_bounds = array<i64: 128, 384>}, {pipeline_mode = #tpu.pipeline_mode<synchronous>, transform_indices = @transform_6, window_bounds = array<i64: 1, 384>}, {pipeline_mode = #tpu.pipeline_mode<synchronous>, transform_indices = @transform_7, window_bounds = array<i64: 128, 64>}, {pipeline_mode = #tpu.pipeline_mode<synchronous>, transform_indices = @transform_8, window_bounds = array<i64: 1, 64>}, {pipeline_mode = #tpu.pipeline_mode<synchronous>, transform_indices = @transform_9, window_bounds = array<i64: 64, 128>}, {pipeline_mode = #tpu.pipeline_mode<synchronous>, transform_indices = @transform_10, window_bounds = array<i64: 1, 128>}, {transform_indices = @transform_11, window_bounds = array<i64: 2, 128>}]} {
    %c0 = arith.constant 0 : index
    %c0_0 = arith.constant 0 : index
    %c0_1 = arith.constant 0 : index
    %c0_2 = arith.constant 0 : index
    %0 = vector.load %arg1[%c0, %c0_0, %c0_1, %c0_2] : memref<4x2x10x16xf32, #tpu.memory_space<vmem>>, vector<4x2x10x16xf32>
    %c0_3 = arith.constant 0 : index
    %c0_4 = arith.constant 0 : index
    %c0_5 = arith.constant 0 : index
    %1 = vector.load %arg2[%c0_3, %c0_4, %c0_5] : memref<3x16x32xbf16, #tpu.memory_space<vmem>>, vector<3x16x32xbf16>
    %2 = vector.extract_strided_slice %0 {offsets = [0, 0, 0, 0], sizes = [4, 2, 8, 16], strides = [1, 1, 1, 1]} : vector<4x2x10x16xf32> to vector<4x2x8x16xf32>
    %3 = vector.shape_cast %2 : vector<4x2x8x16xf32> to vector<64x16xf32>
    %4 = arith.truncf %3 : vector<64x16xf32> to vector<64x16xbf16>
    %5 = vector.extract_strided_slice %1 {offsets = [0, 0, 0], sizes = [1, 16, 32], strides = [1, 1, 1]} : vector<3x16x32xbf16> to vector<1x16x32xbf16>
    %6 = vector.shape_cast %5 : vector<1x16x32xbf16> to vector<16x32xbf16>
    %cst = arith.constant dense<0.000000e+00> : vector<64x32xf32>
    %7 = tpu.matmul %4, %6, %cst {dimension_numbers = #tpu.dot_dimension_numbers<[1], [0], [0], [1], [0, 0, 1, 1], [], []>} : vector<64x16xbf16>, vector<16x32xbf16>, vector<64x32xf32> -> vector<64x32xf32>
    %8 = vector.extract_strided_slice %0 {offsets = [0, 0, 1, 0], sizes = [4, 2, 8, 16], strides = [1, 1, 1, 1]} : vector<4x2x10x16xf32> to vector<4x2x8x16xf32>
    %9 = vector.shape_cast %8 : vector<4x2x8x16xf32> to vector<64x16xf32>
    %10 = arith.truncf %9 : vector<64x16xf32> to vector<64x16xbf16>
    %11 = vector.extract_strided_slice %1 {offsets = [1, 0, 0], sizes = [1, 16, 32], strides = [1, 1, 1]} : vector<3x16x32xbf16> to vector<1x16x32xbf16>
    %12 = vector.shape_cast %11 : vector<1x16x32xbf16> to vector<16x32xbf16>
    %cst_6 = arith.constant dense<0.000000e+00> : vector<64x32xf32>
    %13 = tpu.matmul %10, %12, %cst_6 {dimension_numbers = #tpu.dot_dimension_numbers<[1], [0], [0], [1], [0, 0, 1, 1], [], []>} : vector<64x16xbf16>, vector<16x32xbf16>, vector<64x32xf32> -> vector<64x32xf32>
    %14 = arith.addf %7, %13 : vector<64x32xf32>
    %15 = vector.extract_strided_slice %0 {offsets = [0, 0, 2, 0], sizes = [4, 2, 8, 16], strides = [1, 1, 1, 1]} : vector<4x2x10x16xf32> to vector<4x2x8x16xf32>
    %16 = vector.shape_cast %15 : vector<4x2x8x16xf32> to vector<64x16xf32>
    %17 = arith.truncf %16 : vector<64x16xf32> to vector<64x16xbf16>
    %18 = vector.extract_strided_slice %1 {offsets = [2, 0, 0], sizes = [1, 16, 32], strides = [1, 1, 1]} : vector<3x16x32xbf16> to vector<1x16x32xbf16>
    %19 = vector.shape_cast %18 : vector<1x16x32xbf16> to vector<16x32xbf16>
    %cst_7 = arith.constant dense<0.000000e+00> : vector<64x32xf32>
    %20 = tpu.matmul %17, %19, %cst_7 {dimension_numbers = #tpu.dot_dimension_numbers<[1], [0], [0], [1], [0, 0, 1, 1], [], []>} : vector<64x16xbf16>, vector<16x32xbf16>, vector<64x32xf32> -> vector<64x32xf32>
    %21 = arith.addf %14, %20 : vector<64x32xf32>
    %c0_8 = arith.constant 0 : index
    %c0_9 = arith.constant 0 : index
    %22 = vector.load %arg3[%c0_8, %c0_9] : memref<1x32xf32, #tpu.memory_space<vmem>>, vector<1x32xf32>
    %23 = vector.broadcast %22 : vector<1x32xf32> to vector<64x32xf32>
    %24 = arith.addf %21, %23 : vector<64x32xf32>
    %cst_10 = arith.constant 0.000000e+00 : f32
    %25 = vector.broadcast %cst_10 : f32 to vector<64x32xf32>
    %26 = arith.maximumf %24, %25 : vector<64x32xf32>
    %27 = vector.shape_cast %26 : vector<64x32xf32> to vector<8x8x32xf32>
    %c0_11 = arith.constant 0 : index
    %c0_12 = arith.constant 0 : index
    %28 = vector.load %arg4[%c0_11, %c0_12] : memref<128x384xbf16, #tpu.memory_space<vmem>>, vector<128x384xbf16>
    %c0_13 = arith.constant 0 : index
    %c0_14 = arith.constant 0 : index
    %29 = vector.load %arg6[%c0_13, %c0_14] : memref<128x384xbf16, #tpu.memory_space<vmem>>, vector<128x384xbf16>
    %c0_15 = arith.constant 0 : index
    %c0_16 = arith.constant 0 : index
    %30 = vector.load %arg7[%c0_15, %c0_16] : memref<1x384xf32, #tpu.memory_space<vmem>>, vector<1x384xf32>
    %31 = vector.extract_strided_slice %27 {offsets = [0, 0, 0], sizes = [8, 2, 32], strides = [1, 1, 1]} : vector<8x8x32xf32> to vector<8x2x32xf32>
    %cst_17 = arith.constant dense<0xFF800000> : vector<8x32xf32>
    %32 = vector.multi_reduction <maximumf>, %31, %cst_17 [1] : vector<8x2x32xf32> to vector<8x32xf32>
    %33 = arith.truncf %32 : vector<8x32xf32> to vector<8x32xbf16>
    %34 = vector.extract_strided_slice %28 {offsets = [0, 0], sizes = [32, 384], strides = [1, 1]} : vector<128x384xbf16> to vector<32x384xbf16>
    %cst_18 = arith.constant dense<0.000000e+00> : vector<8x384xf32>
    %35 = tpu.matmul %33, %34, %cst_18 {dimension_numbers = #tpu.dot_dimension_numbers<[1], [0], [0], [1], [0, 0, 1, 1], [], []>} : vector<8x32xbf16>, vector<32x384xbf16>, vector<8x384xf32> -> vector<8x384xf32>
    %36 = vector.extract_strided_slice %27 {offsets = [0, 2, 0], sizes = [8, 2, 32], strides = [1, 1, 1]} : vector<8x8x32xf32> to vector<8x2x32xf32>
    %cst_19 = arith.constant dense<0xFF800000> : vector<8x32xf32>
    %37 = vector.multi_reduction <maximumf>, %36, %cst_19 [1] : vector<8x2x32xf32> to vector<8x32xf32>
    %38 = arith.truncf %37 : vector<8x32xf32> to vector<8x32xbf16>
    %39 = vector.extract_strided_slice %28 {offsets = [32, 0], sizes = [32, 384], strides = [1, 1]} : vector<128x384xbf16> to vector<32x384xbf16>
    %cst_20 = arith.constant dense<0.000000e+00> : vector<8x384xf32>
    %40 = tpu.matmul %38, %39, %cst_20 {dimension_numbers = #tpu.dot_dimension_numbers<[1], [0], [0], [1], [0, 0, 1, 1], [], []>} : vector<8x32xbf16>, vector<32x384xbf16>, vector<8x384xf32> -> vector<8x384xf32>
    %41 = arith.addf %35, %40 : vector<8x384xf32>
    %42 = vector.extract_strided_slice %27 {offsets = [0, 4, 0], sizes = [8, 2, 32], strides = [1, 1, 1]} : vector<8x8x32xf32> to vector<8x2x32xf32>
    %cst_21 = arith.constant dense<0xFF800000> : vector<8x32xf32>
    %43 = vector.multi_reduction <maximumf>, %42, %cst_21 [1] : vector<8x2x32xf32> to vector<8x32xf32>
    %44 = arith.truncf %43 : vector<8x32xf32> to vector<8x32xbf16>
    %45 = vector.extract_strided_slice %28 {offsets = [64, 0], sizes = [32, 384], strides = [1, 1]} : vector<128x384xbf16> to vector<32x384xbf16>
    %cst_22 = arith.constant dense<0.000000e+00> : vector<8x384xf32>
    %46 = tpu.matmul %44, %45, %cst_22 {dimension_numbers = #tpu.dot_dimension_numbers<[1], [0], [0], [1], [0, 0, 1, 1], [], []>} : vector<8x32xbf16>, vector<32x384xbf16>, vector<8x384xf32> -> vector<8x384xf32>
    %47 = arith.addf %41, %46 : vector<8x384xf32>
    %48 = vector.extract_strided_slice %27 {offsets = [0, 6, 0], sizes = [8, 2, 32], strides = [1, 1, 1]} : vector<8x8x32xf32> to vector<8x2x32xf32>
    %cst_23 = arith.constant dense<0xFF800000> : vector<8x32xf32>
    %49 = vector.multi_reduction <maximumf>, %48, %cst_23 [1] : vector<8x2x32xf32> to vector<8x32xf32>
    %50 = arith.truncf %49 : vector<8x32xf32> to vector<8x32xbf16>
    %51 = vector.extract_strided_slice %28 {offsets = [96, 0], sizes = [32, 384], strides = [1, 1]} : vector<128x384xbf16> to vector<32x384xbf16>
    %cst_24 = arith.constant dense<0.000000e+00> : vector<8x384xf32>
    %52 = tpu.matmul %50, %51, %cst_24 {dimension_numbers = #tpu.dot_dimension_numbers<[1], [0], [0], [1], [0, 0, 1, 1], [], []>} : vector<8x32xbf16>, vector<32x384xbf16>, vector<8x384xf32> -> vector<8x384xf32>
    %53 = arith.addf %47, %52 : vector<8x384xf32>
    %c0_25 = arith.constant 0 : index
    %c0_26 = arith.constant 0 : index
    %54 = vector.load %arg5[%c0_25, %c0_26] : memref<1x384xf32, #tpu.memory_space<vmem>>, vector<1x384xf32>
    %55 = vector.broadcast %54 : vector<1x384xf32> to vector<8x384xf32>
    %56 = arith.addf %53, %55 : vector<8x384xf32>
    %cst_27 = arith.constant 0.000000e+00 : f32
    %57 = vector.broadcast %cst_27 : f32 to vector<2x128xf32>
    %58 = arith.truncf %57 : vector<2x128xf32> to vector<2x128xbf16>
    %cst_28 = arith.constant dense<0.000000e+00> : vector<2x384xf32>
    %59 = tpu.matmul %58, %29, %cst_28 {dimension_numbers = #tpu.dot_dimension_numbers<[1], [0], [0], [1], [0, 0, 1, 1], [], []>} : vector<2x128xbf16>, vector<128x384xbf16>, vector<2x384xf32> -> vector<2x384xf32>
    %60 = vector.broadcast %30 : vector<1x384xf32> to vector<2x384xf32>
    %61 = arith.addf %59, %60 : vector<2x384xf32>
    %62 = vector.extract_strided_slice %56 {offsets = [0, 0], sizes = [2, 384], strides = [1, 1]} : vector<8x384xf32> to vector<2x384xf32>
    %63 = vector.extract_strided_slice %62 {offsets = [0, 0], sizes = [2, 128], strides = [1, 1]} : vector<2x384xf32> to vector<2x128xf32>
    %64 = vector.extract_strided_slice %61 {offsets = [0, 0], sizes = [2, 128], strides = [1, 1]} : vector<2x384xf32> to vector<2x128xf32>
    %65 = arith.addf %63, %64 : vector<2x128xf32>
    %66 = arith.negf %65 : vector<2x128xf32>
    %67 = math.exp %66 : vector<2x128xf32>
    %cst_29 = arith.constant 1.000000e+00 : f32
    %68 = vector.broadcast %cst_29 : f32 to vector<2x128xf32>
    %69 = arith.addf %68, %67 : vector<2x128xf32>
    %70 = arith.divf %68, %69 : vector<2x128xf32>
    %71 = vector.extract_strided_slice %62 {offsets = [0, 128], sizes = [2, 128], strides = [1, 1]} : vector<2x384xf32> to vector<2x128xf32>
    %72 = vector.extract_strided_slice %61 {offsets = [0, 128], sizes = [2, 128], strides = [1, 1]} : vector<2x384xf32> to vector<2x128xf32>
    %73 = arith.addf %71, %72 : vector<2x128xf32>
    %74 = arith.negf %73 : vector<2x128xf32>
    %75 = math.exp %74 : vector<2x128xf32>
    %cst_30 = arith.constant 1.000000e+00 : f32
    %76 = vector.broadcast %cst_30 : f32 to vector<2x128xf32>
    %77 = arith.addf %76, %75 : vector<2x128xf32>
    %78 = arith.divf %76, %77 : vector<2x128xf32>
    %79 = vector.extract_strided_slice %62 {offsets = [0, 256], sizes = [2, 128], strides = [1, 1]} : vector<2x384xf32> to vector<2x128xf32>
    %80 = vector.extract_strided_slice %61 {offsets = [0, 256], sizes = [2, 128], strides = [1, 1]} : vector<2x384xf32> to vector<2x128xf32>
    %81 = arith.mulf %70, %80 : vector<2x128xf32>
    %82 = arith.addf %79, %81 : vector<2x128xf32>
    %83 = math.tanh %82 : vector<2x128xf32>
    %cst_31 = arith.constant 1.000000e+00 : f32
    %84 = vector.broadcast %cst_31 : f32 to vector<2x128xf32>
    %85 = arith.subf %84, %78 : vector<2x128xf32>
    %86 = arith.mulf %85, %83 : vector<2x128xf32>
    %87 = arith.mulf %78, %57 : vector<2x128xf32>
    %88 = arith.addf %86, %87 : vector<2x128xf32>
    %89 = arith.truncf %88 : vector<2x128xf32> to vector<2x128xbf16>
    %cst_32 = arith.constant dense<0.000000e+00> : vector<2x384xf32>
    %90 = tpu.matmul %89, %29, %cst_32 {dimension_numbers = #tpu.dot_dimension_numbers<[1], [0], [0], [1], [0, 0, 1, 1], [], []>} : vector<2x128xbf16>, vector<128x384xbf16>, vector<2x384xf32> -> vector<2x384xf32>
    %91 = vector.broadcast %30 : vector<1x384xf32> to vector<2x384xf32>
    %92 = arith.addf %90, %91 : vector<2x384xf32>
    %93 = vector.extract_strided_slice %56 {offsets = [2, 0], sizes = [2, 384], strides = [1, 1]} : vector<8x384xf32> to vector<2x384xf32>
    %94 = vector.extract_strided_slice %93 {offsets = [0, 0], sizes = [2, 128], strides = [1, 1]} : vector<2x384xf32> to vector<2x128xf32>
    %95 = vector.extract_strided_slice %92 {offsets = [0, 0], sizes = [2, 128], strides = [1, 1]} : vector<2x384xf32> to vector<2x128xf32>
    %96 = arith.addf %94, %95 : vector<2x128xf32>
    %97 = arith.negf %96 : vector<2x128xf32>
    %98 = math.exp %97 : vector<2x128xf32>
    %cst_33 = arith.constant 1.000000e+00 : f32
    %99 = vector.broadcast %cst_33 : f32 to vector<2x128xf32>
    %100 = arith.addf %99, %98 : vector<2x128xf32>
    %101 = arith.divf %99, %100 : vector<2x128xf32>
    %102 = vector.extract_strided_slice %93 {offsets = [0, 128], sizes = [2, 128], strides = [1, 1]} : vector<2x384xf32> to vector<2x128xf32>
    %103 = vector.extract_strided_slice %92 {offsets = [0, 128], sizes = [2, 128], strides = [1, 1]} : vector<2x384xf32> to vector<2x128xf32>
    %104 = arith.addf %102, %103 : vector<2x128xf32>
    %105 = arith.negf %104 : vector<2x128xf32>
    %106 = math.exp %105 : vector<2x128xf32>
    %cst_34 = arith.constant 1.000000e+00 : f32
    %107 = vector.broadcast %cst_34 : f32 to vector<2x128xf32>
    %108 = arith.addf %107, %106 : vector<2x128xf32>
    %109 = arith.divf %107, %108 : vector<2x128xf32>
    %110 = vector.extract_strided_slice %93 {offsets = [0, 256], sizes = [2, 128], strides = [1, 1]} : vector<2x384xf32> to vector<2x128xf32>
    %111 = vector.extract_strided_slice %92 {offsets = [0, 256], sizes = [2, 128], strides = [1, 1]} : vector<2x384xf32> to vector<2x128xf32>
    %112 = arith.mulf %101, %111 : vector<2x128xf32>
    %113 = arith.addf %110, %112 : vector<2x128xf32>
    %114 = math.tanh %113 : vector<2x128xf32>
    %cst_35 = arith.constant 1.000000e+00 : f32
    %115 = vector.broadcast %cst_35 : f32 to vector<2x128xf32>
    %116 = arith.subf %115, %109 : vector<2x128xf32>
    %117 = arith.mulf %116, %114 : vector<2x128xf32>
    %118 = arith.mulf %109, %88 : vector<2x128xf32>
    %119 = arith.addf %117, %118 : vector<2x128xf32>
    %120 = arith.truncf %119 : vector<2x128xf32> to vector<2x128xbf16>
    %cst_36 = arith.constant dense<0.000000e+00> : vector<2x384xf32>
    %121 = tpu.matmul %120, %29, %cst_36 {dimension_numbers = #tpu.dot_dimension_numbers<[1], [0], [0], [1], [0, 0, 1, 1], [], []>} : vector<2x128xbf16>, vector<128x384xbf16>, vector<2x384xf32> -> vector<2x384xf32>
    %122 = vector.broadcast %30 : vector<1x384xf32> to vector<2x384xf32>
    %123 = arith.addf %121, %122 : vector<2x384xf32>
    %124 = vector.extract_strided_slice %56 {offsets = [4, 0], sizes = [2, 384], strides = [1, 1]} : vector<8x384xf32> to vector<2x384xf32>
    %125 = vector.extract_strided_slice %124 {offsets = [0, 0], sizes = [2, 128], strides = [1, 1]} : vector<2x384xf32> to vector<2x128xf32>
    %126 = vector.extract_strided_slice %123 {offsets = [0, 0], sizes = [2, 128], strides = [1, 1]} : vector<2x384xf32> to vector<2x128xf32>
    %127 = arith.addf %125, %126 : vector<2x128xf32>
    %128 = arith.negf %127 : vector<2x128xf32>
    %129 = math.exp %128 : vector<2x128xf32>
    %cst_37 = arith.constant 1.000000e+00 : f32
    %130 = vector.broadcast %cst_37 : f32 to vector<2x128xf32>
    %131 = arith.addf %130, %129 : vector<2x128xf32>
    %132 = arith.divf %130, %131 : vector<2x128xf32>
    %133 = vector.extract_strided_slice %124 {offsets = [0, 128], sizes = [2, 128], strides = [1, 1]} : vector<2x384xf32> to vector<2x128xf32>
    %134 = vector.extract_strided_slice %123 {offsets = [0, 128], sizes = [2, 128], strides = [1, 1]} : vector<2x384xf32> to vector<2x128xf32>
    %135 = arith.addf %133, %134 : vector<2x128xf32>
    %136 = arith.negf %135 : vector<2x128xf32>
    %137 = math.exp %136 : vector<2x128xf32>
    %cst_38 = arith.constant 1.000000e+00 : f32
    %138 = vector.broadcast %cst_38 : f32 to vector<2x128xf32>
    %139 = arith.addf %138, %137 : vector<2x128xf32>
    %140 = arith.divf %138, %139 : vector<2x128xf32>
    %141 = vector.extract_strided_slice %124 {offsets = [0, 256], sizes = [2, 128], strides = [1, 1]} : vector<2x384xf32> to vector<2x128xf32>
    %142 = vector.extract_strided_slice %123 {offsets = [0, 256], sizes = [2, 128], strides = [1, 1]} : vector<2x384xf32> to vector<2x128xf32>
    %143 = arith.mulf %132, %142 : vector<2x128xf32>
    %144 = arith.addf %141, %143 : vector<2x128xf32>
    %145 = math.tanh %144 : vector<2x128xf32>
    %cst_39 = arith.constant 1.000000e+00 : f32
    %146 = vector.broadcast %cst_39 : f32 to vector<2x128xf32>
    %147 = arith.subf %146, %140 : vector<2x128xf32>
    %148 = arith.mulf %147, %145 : vector<2x128xf32>
    %149 = arith.mulf %140, %119 : vector<2x128xf32>
    %150 = arith.addf %148, %149 : vector<2x128xf32>
    %151 = arith.truncf %150 : vector<2x128xf32> to vector<2x128xbf16>
    %cst_40 = arith.constant dense<0.000000e+00> : vector<2x384xf32>
    %152 = tpu.matmul %151, %29, %cst_40 {dimension_numbers = #tpu.dot_dimension_numbers<[1], [0], [0], [1], [0, 0, 1, 1], [], []>} : vector<2x128xbf16>, vector<128x384xbf16>, vector<2x384xf32> -> vector<2x384xf32>
    %153 = vector.broadcast %30 : vector<1x384xf32> to vector<2x384xf32>
    %154 = arith.addf %152, %153 : vector<2x384xf32>
    %155 = vector.extract_strided_slice %56 {offsets = [6, 0], sizes = [2, 384], strides = [1, 1]} : vector<8x384xf32> to vector<2x384xf32>
    %156 = vector.extract_strided_slice %155 {offsets = [0, 0], sizes = [2, 128], strides = [1, 1]} : vector<2x384xf32> to vector<2x128xf32>
    %157 = vector.extract_strided_slice %154 {offsets = [0, 0], sizes = [2, 128], strides = [1, 1]} : vector<2x384xf32> to vector<2x128xf32>
    %158 = arith.addf %156, %157 : vector<2x128xf32>
    %159 = arith.negf %158 : vector<2x128xf32>
    %160 = math.exp %159 : vector<2x128xf32>
    %cst_41 = arith.constant 1.000000e+00 : f32
    %161 = vector.broadcast %cst_41 : f32 to vector<2x128xf32>
    %162 = arith.addf %161, %160 : vector<2x128xf32>
    %163 = arith.divf %161, %162 : vector<2x128xf32>
    %164 = vector.extract_strided_slice %155 {offsets = [0, 128], sizes = [2, 128], strides = [1, 1]} : vector<2x384xf32> to vector<2x128xf32>
    %165 = vector.extract_strided_slice %154 {offsets = [0, 128], sizes = [2, 128], strides = [1, 1]} : vector<2x384xf32> to vector<2x128xf32>
    %166 = arith.addf %164, %165 : vector<2x128xf32>
    %167 = arith.negf %166 : vector<2x128xf32>
    %168 = math.exp %167 : vector<2x128xf32>
    %cst_42 = arith.constant 1.000000e+00 : f32
    %169 = vector.broadcast %cst_42 : f32 to vector<2x128xf32>
    %170 = arith.addf %169, %168 : vector<2x128xf32>
    %171 = arith.divf %169, %170 : vector<2x128xf32>
    %172 = vector.extract_strided_slice %155 {offsets = [0, 256], sizes = [2, 128], strides = [1, 1]} : vector<2x384xf32> to vector<2x128xf32>
    %173 = vector.extract_strided_slice %154 {offsets = [0, 256], sizes = [2, 128], strides = [1, 1]} : vector<2x384xf32> to vector<2x128xf32>
    %174 = arith.mulf %163, %173 : vector<2x128xf32>
    %175 = arith.addf %172, %174 : vector<2x128xf32>
    %176 = math.tanh %175 : vector<2x128xf32>
    %cst_43 = arith.constant 1.000000e+00 : f32
    %177 = vector.broadcast %cst_43 : f32 to vector<2x128xf32>
    %178 = arith.subf %177, %171 : vector<2x128xf32>
    %179 = arith.mulf %178, %176 : vector<2x128xf32>
    %180 = arith.mulf %171, %150 : vector<2x128xf32>
    %181 = arith.addf %179, %180 : vector<2x128xf32>
    %182 = arith.truncf %181 : vector<2x128xf32> to vector<2x128xbf16>
    %c0_44 = arith.constant 0 : index
    %c0_45 = arith.constant 0 : index
    %183 = vector.load %arg8[%c0_44, %c0_45] : memref<128x64xbf16, #tpu.memory_space<vmem>>, vector<128x64xbf16>
    %cst_46 = arith.constant dense<0.000000e+00> : vector<2x64xf32>
    %184 = tpu.matmul %182, %183, %cst_46 {dimension_numbers = #tpu.dot_dimension_numbers<[1], [0], [0], [1], [0, 0, 1, 1], [], []>} : vector<2x128xbf16>, vector<128x64xbf16>, vector<2x64xf32> -> vector<2x64xf32>
    %c0_47 = arith.constant 0 : index
    %c0_48 = arith.constant 0 : index
    %185 = vector.load %arg9[%c0_47, %c0_48] : memref<1x64xf32, #tpu.memory_space<vmem>>, vector<1x64xf32>
    %186 = vector.broadcast %185 : vector<1x64xf32> to vector<2x64xf32>
    %187 = arith.addf %184, %186 : vector<2x64xf32>
    %cst_49 = arith.constant 0.000000e+00 : f32
    %188 = vector.broadcast %cst_49 : f32 to vector<2x64xf32>
    %189 = arith.maximumf %187, %188 : vector<2x64xf32>
    %190 = arith.truncf %189 : vector<2x64xf32> to vector<2x64xbf16>
    %c0_50 = arith.constant 0 : index
    %c0_51 = arith.constant 0 : index
    %191 = vector.load %arg10[%c0_50, %c0_51] : memref<64x128xbf16, #tpu.memory_space<vmem>>, vector<64x128xbf16>
    %cst_52 = arith.constant dense<0.000000e+00> : vector<2x128xf32>
    %192 = tpu.matmul %190, %191, %cst_52 {dimension_numbers = #tpu.dot_dimension_numbers<[1], [0], [0], [1], [0, 0, 1, 1], [], []>} : vector<2x64xbf16>, vector<64x128xbf16>, vector<2x128xf32> -> vector<2x128xf32>
    %c0_53 = arith.constant 0 : index
    %c0_54 = arith.constant 0 : index
    %193 = vector.load %arg11[%c0_53, %c0_54] : memref<1x128xf32, #tpu.memory_space<vmem>>, vector<1x128xf32>
    %194 = vector.broadcast %193 : vector<1x128xf32> to vector<2x128xf32>
    %195 = arith.addf %192, %194 : vector<2x128xf32>
    %c0_55 = arith.constant 0 : index
    %c0_56 = arith.constant 0 : index
    %196 = vector.load %arg12[%c0_55, %c0_56] : memref<2x128xf32, #tpu.memory_space<vmem>>, vector<2x128xf32>
    tpu.vector_store %arg12[%c0_55, %c0_56], %195 {strides = array<i32>} : memref<2x128xf32, #tpu.memory_space<vmem>>, vector<2x128xf32>,
    return
  }
  func.func @transform_0(%arg0: i32) -> (i32, i32, i32, i32) {
    %c0_i32 = arith.constant 0 : i32
    %c0_i32_0 = arith.constant 0 : i32
    %c0_i32_1 = arith.constant 0 : i32
    %c0_i32_2 = arith.constant 0 : i32
    return %c0_i32, %arg0, %c0_i32_0, %c0_i32_1 : i32, i32, i32, i32
  }
  func.func @transform_1(%arg0: i32) -> (i32, i32, i32) {
    %c0_i32 = arith.constant 0 : i32
    %c0_i32_0 = arith.constant 0 : i32
    %c0_i32_1 = arith.constant 0 : i32
    %c0_i32_2 = arith.constant 0 : i32
    return %c0_i32, %c0_i32_0, %c0_i32_1 : i32, i32, i32
  }
  func.func @transform_2(%arg0: i32) -> (i32, i32) {
    %c0_i32 = arith.constant 0 : i32
    %c0_i32_0 = arith.constant 0 : i32
    %c0_i32_1 = arith.constant 0 : i32
    return %c0_i32, %c0_i32_0 : i32, i32
  }
  func.func @transform_3(%arg0: i32) -> (i32, i32) {
    %c0_i32 = arith.constant 0 : i32
    %c0_i32_0 = arith.constant 0 : i32
    %c0_i32_1 = arith.constant 0 : i32
    return %c0_i32, %c0_i32_0 : i32, i32
  }
  func.func @transform_4(%arg0: i32) -> (i32, i32) {
    %c0_i32 = arith.constant 0 : i32
    %c0_i32_0 = arith.constant 0 : i32
    %c0_i32_1 = arith.constant 0 : i32
    return %c0_i32, %c0_i32_0 : i32, i32
  }
  func.func @transform_5(%arg0: i32) -> (i32, i32) {
    %c0_i32 = arith.constant 0 : i32
    %c0_i32_0 = arith.constant 0 : i32
    %c0_i32_1 = arith.constant 0 : i32
    return %c0_i32, %c0_i32_0 : i32, i32
  }
  func.func @transform_6(%arg0: i32) -> (i32, i32) {
    %c0_i32 = arith.constant 0 : i32
    %c0_i32_0 = arith.constant 0 : i32
    %c0_i32_1 = arith.constant 0 : i32
    return %c0_i32, %c0_i32_0 : i32, i32
  }
  func.func @transform_7(%arg0: i32) -> (i32, i32) {
    %c0_i32 = arith.constant 0 : i32
    %c0_i32_0 = arith.constant 0 : i32
    %c0_i32_1 = arith.constant 0 : i32
    return %c0_i32, %c0_i32_0 : i32, i32
  }
  func.func @transform_8(%arg0: i32) -> (i32, i32) {
    %c0_i32 = arith.constant 0 : i32
    %c0_i32_0 = arith.constant 0 : i32
    %c0_i32_1 = arith.constant 0 : i32
    return %c0_i32, %c0_i32_0 : i32, i32
  }
  func.func @transform_9(%arg0: i32) -> (i32, i32) {
    %c0_i32 = arith.constant 0 : i32
    %c0_i32_0 = arith.constant 0 : i32
    %c0_i32_1 = arith.constant 0 : i32
    return %c0_i32, %c0_i32_0 : i32, i32
  }
  func.func @transform_10(%arg0: i32) -> (i32, i32) {
    %c0_i32 = arith.constant 0 : i32
    %c0_i32_0 = arith.constant 0 : i32
    %c0_i32_1 = arith.constant 0 : i32
    return %c0_i32, %c0_i32_0 : i32, i32
  }
  func.func @transform_11(%arg0: i32) -> (i32, i32) {
    %c0_i32 = arith.constant 0 : i32
    %c0_i32_0 = arith.constant 0 : i32
    return %arg0, %c0_i32 : i32, i32
  }
}

</mosaic_0001>

<llo_original>
// kernel: cnn_predictor_forward.1
$region0: #{cnn_predictor_forward.1}
  #allocation0 [shape = 'u32[]', space=smem, size = 0x4, offset = 0x4, fixed_abs, tag = 'smem constant byte address 0x4 - core index']
  #allocation1 [shape = 'u32[144,128]{1,0:T(1,128)}', space=vmem, size = 0x12000, scoped, tag = 'internal scratch']
  %s0 = inlined_call_operand.vmem [shape: f32[4,2,10,16], index: 0, kind: input, shape index: {}]
  %s1 = inlined_call_operand.hbm [shape: bf16[3,16,32], index: 1, kind: input, shape index: {}]
  %s2 = inlined_call_operand.hbm [shape: f32[1,32], index: 2, kind: input, shape index: {}]
  %s3 = inlined_call_operand.vmem [shape: bf16[128,384], index: 3, kind: input, shape index: {}]
  %s4 = inlined_call_operand.vmem [shape: f32[1,384], index: 4, kind: input, shape index: {}]
  %s5 = inlined_call_operand.vmem [shape: bf16[128,384], index: 5, kind: input, shape index: {}]
  %s6 = inlined_call_operand.vmem [shape: f32[1,384], index: 6, kind: input, shape index: {}]
  %s7 = inlined_call_operand.vmem [shape: bf16[128,64], index: 7, kind: input, shape index: {}]
  %s8 = inlined_call_operand.hbm [shape: f32[1,64], index: 8, kind: input, shape index: {}]
  %s9 = inlined_call_operand.vmem [shape: bf16[64,128], index: 9, kind: input, shape index: {}]
  %s10 = inlined_call_operand.hbm [shape: f32[1,128], index: 10, kind: input, shape index: {}]
  %s11 = inlined_call_operand.hbm [shape: f32[2,128], index: 11, kind: output, shape index: {}]
  %s12 = sld [smem:[#allocation0]]
  $region70: #{cnn_predictor_forward.1} parent=0
    _
  %s14 = ssub.s32 1, %s12
  %s15 = scalar_select 0, %s14, %s12
  $region1: #{cnn_predictor_forward.1} parent=0
    #allocation2 [shape = 'u8[12288]{0}', space=vmem, size = 0x3000, scoped, tag = 'input window, operand 1, single buffered']
    #allocation3 [shape = 's32[1]{0}', space=sflag, size = 0x4, scoped, tag = 'scoped memory for cnn_predictor_forward.1']
    #allocation4 [shape = 's32[1]{0}', space=sflag, size = 0x4, scoped, tag = 'scoped memory for cnn_predictor_forward.1']
    #allocation5 [shape = 'u8[512]{0}', space=vmem, size = 0x400, scoped, tag = 'input window, operand 2, single buffered']
    #allocation6 [shape = 's32[1]{0}', space=sflag, size = 0x4, scoped, tag = 'scoped memory for cnn_predictor_forward.1']
    #allocation7 [shape = 'u8[512]{0}', space=vmem, size = 0x400, scoped, tag = 'input window, operand 8, single buffered']
    #allocation8 [shape = 'u8[512]{0}', space=vmem, size = 0x400, scoped, tag = 'input window, operand 10, single buffered']
    #allocation9 [shape = 's32[1]{0}', space=sflag, size = 0x4, scoped, tag = 'scoped memory for cnn_predictor_forward.1']
    #allocation10 [shape = 'u8[1024]{0}', space=vmem, size = 0x400, scoped, tag = 'output window, operand 0, single buffered']
    %16 = vsyncpa [#allocation3], 0
    %17 = vsyncpa [#allocation6], 0
    %18 = vsyncpa [#allocation9], 0
    %19 = vsyncpa [#allocation4], 0
    // Predicated region
    $region2: #{cnn_predictor_forward.1} parent=1 // pred_check
      _
    $region3: #{cnn_predictor_forward.1} parent=1 // pred_check_branch
      %21 = sbr.rel (0) target = $region5
    $region4: #{cnn_predictor_forward.1} parent=1 // pred_region
      _
    $region5: #{cnn_predictor_forward.1} parent=1 // pred_fallthru
      _
    // Predicated region
    $region6: #{cnn_predictor_forward.1} parent=1 // pred_check
      _
    $region7: #{cnn_predictor_forward.1} parent=1 // pred_check_branch
      %23 = sbr.rel (0) target = $region9
    $region8: #{cnn_predictor_forward.1} parent=1 // pred_region
      %s25 = ssub.s32 384, 384
      %26 = vsyncadd [#allocation3], %s25
      %s27 = sshll.u32 [#allocation2], 4
      %s28 = int_to_ptr.vmem [resolvable:$true] %s27
      %33 = dma.hbm_to_vmem [thread:$0]  %s1, 384, %s28, [#allocation3], 64, 64, 4
    $region9: #{cnn_predictor_forward.1} parent=1 // pred_fallthru
      _
    // Predicated region
    $region10: #{cnn_predictor_forward.1} parent=1 // pred_check
      _
    $region11: #{cnn_predictor_forward.1} parent=1 // pred_check_branch
      %35 = sbr.rel (0) target = $region13
    $region12: #{cnn_predictor_forward.1} parent=1 // pred_region
      %s37 = ssub.s32 16, 16
      %38 = vsyncadd [#allocation6], %s37
      %s40 = sshll.u32 [#allocation5], 4
      %s41 = int_to_ptr.vmem [resolvable:$true] %s40
      %43 = dma.hbm_to_vmem [thread:$0]  %s2, 16, %s41, [#allocation6]
    $region13: #{cnn_predictor_forward.1} parent=1 // pred_fallthru
      _
    // Predicated region
    $region14: #{cnn_predictor_forward.1} parent=1 // pred_check
      _
    $region15: #{cnn_predictor_forward.1} parent=1 // pred_check_branch
      %45 = sbr.rel (0) target = $region17
    $region16: #{cnn_predictor_forward.1} parent=1 // pred_region
      _
    $region17: #{cnn_predictor_forward.1} parent=1 // pred_fallthru
      _
    // Predicated region
    $region18: #{cnn_predictor_forward.1} parent=1 // pred_check
      _
    $region19: #{cnn_predictor_forward.1} parent=1 // pred_check_branch
      %47 = sbr.rel (0) target = $region21
    $region20: #{cnn_predictor_forward.1} parent=1 // pred_region
      _
    $region21: #{cnn_predictor_forward.1} parent=1 // pred_fallthru
      _
    // Predicated region
    $region22: #{cnn_predictor_forward.1} parent=1 // pred_check
      _
    $region23: #{cnn_predictor_forward.1} parent=1 // pred_check_branch
      %49 = sbr.rel (0) target = $region25
    $region24: #{cnn_predictor_forward.1} parent=1 // pred_region
      _
    $region25: #{cnn_predictor_forward.1} parent=1 // pred_fallthru
      _
    // Predicated region
    $region26: #{cnn_predictor_forward.1} parent=1 // pred_check
      _
    $region27: #{cnn_predictor_forward.1} parent=1 // pred_check_branch
      %51 = sbr.rel (0) target = $region29
    $region28: #{cnn_predictor_forward.1} parent=1 // pred_region
      _
    $region29: #{cnn_predictor_forward.1} parent=1 // pred_fallthru
      _
    // Predicated region
    $region30: #{cnn_predictor_forward.1} parent=1 // pred_check
      _
    $region31: #{cnn_predictor_forward.1} parent=1 // pred_check_branch
      %53 = sbr.rel (0) target = $region33
    $region32: #{cnn_predictor_forward.1} parent=1 // pred_region
      _
    $region33: #{cnn_predictor_forward.1} parent=1 // pred_fallthru
      _
    // Predicated region
    $region34: #{cnn_predictor_forward.1} parent=1 // pred_check
      _
    $region35: #{cnn_predictor_forward.1} parent=1 // pred_check_branch
      %55 = sbr.rel (0) target = $region37
    $region36: #{cnn_predictor_forward.1} parent=1 // pred_region
      %s57 = ssub.s32 16, 16
      %58 = vsyncadd [#allocation6], %s57
      %s60 = sshll.u32 [#allocation7], 4
      %s61 = int_to_ptr.vmem [resolvable:$true] %s60
      %63 = dma.hbm_to_vmem [thread:$0]  %s8, 16, %s61, [#allocation6]
    $region37: #{cnn_predictor_forward.1} parent=1 // pred_fallthru
      _
    // Predicated region
    $region38: #{cnn_predictor_forward.1} parent=1 // pred_check
      _
    $region39: #{cnn_predictor_forward.1} parent=1 // pred_check_branch
      %65 = sbr.rel (0) target = $region41
    $region40: #{cnn_predictor_forward.1} parent=1 // pred_region
      _
    $region41: #{cnn_predictor_forward.1} parent=1 // pred_fallthru
      _
    // Predicated region
    $region42: #{cnn_predictor_forward.1} parent=1 // pred_check
      _
    $region43: #{cnn_predictor_forward.1} parent=1 // pred_check_branch
      %67 = sbr.rel (0) target = $region45
    $region44: #{cnn_predictor_forward.1} parent=1 // pred_region
      %s69 = ssub.s32 16, 16
      %70 = vsyncadd [#allocation9], %s69
      %s72 = sshll.u32 [#allocation8], 4
      %s73 = int_to_ptr.vmem [resolvable:$true] %s72
      %75 = dma.hbm_to_vmem [thread:$0]  %s10, 16, %s73, [#allocation9]
    $region45: #{cnn_predictor_forward.1} parent=1 // pred_fallthru
      _
    // Predicated region
    $region46: #{cnn_predictor_forward.1} parent=1 // pred_check
      _
    $region47: #{cnn_predictor_forward.1} parent=1 // pred_check_branch
      %77 = sbr.rel (0) target = $region49
    $region48: #{cnn_predictor_forward.1} parent=1 // pred_region
      %78 = dma.done [#allocation3], 384
    $region49: #{cnn_predictor_forward.1} parent=1 // pred_fallthru
      _
    // Predicated region
    $region50: #{cnn_predictor_forward.1} parent=1 // pred_check
      _
    $region51: #{cnn_predictor_forward.1} parent=1 // pred_check_branch
      %80 = sbr.rel (0) target = $region53
    $region52: #{cnn_predictor_forward.1} parent=1 // pred_region
      %81 = dma.done [#allocation6], 16
    $region53: #{cnn_predictor_forward.1} parent=1 // pred_fallthru
      _
    // Predicated region
    $region54: #{cnn_predictor_forward.1} parent=1 // pred_check
      _
    $region55: #{cnn_predictor_forward.1} parent=1 // pred_check_branch
      %83 = sbr.rel (0) target = $region57
    $region56: #{cnn_predictor_forward.1} parent=1 // pred_region
      %84 = dma.done [#allocation6], 16
    $region57: #{cnn_predictor_forward.1} parent=1 // pred_fallthru
      _
    // Predicated region
    $region58: #{cnn_predictor_forward.1} parent=1 // pred_check
      _
    $region59: #{cnn_predictor_forward.1} parent=1 // pred_check_branch
      %86 = sbr.rel (0) target = $region61
    $region60: #{cnn_predictor_forward.1} parent=1 // pred_region
      %87 = dma.done [#allocation9], 16
    $region61: #{cnn_predictor_forward.1} parent=1 // pred_fallthru
      _
    %v89 = vld [vmem:[%s0] sm:$0xff]
    %v90 = vld [vmem:[%s0 + $0x8] sm:$0x3]
    %v91 = vld [vmem:[%s0 + $0x10] sm:$0xff]
    %v92 = vld [vmem:[%s0 + $0x18] sm:$0x3]
    %v93 = vld [vmem:[%s0 + $0x20] sm:$0xff]
    %v94 = vld [vmem:[%s0 + $0x28] sm:$0x3]
    %v95 = vld [vmem:[%s0 + $0x30] sm:$0xff]
    %v96 = vld [vmem:[%s0 + $0x38] sm:$0x3]
    %v97 = vld [vmem:[%s0 + $0x40] sm:$0xff]
    %v98 = vld [vmem:[%s0 + $0x48] sm:$0x3]
    %v99 = vld [vmem:[%s0 + $0x50] sm:$0xff]
    %v100 = vld [vmem:[%s0 + $0x58] sm:$0x3]
    %v101 = vld [vmem:[%s0 + $0x60] sm:$0xff]
    %v102 = vld [vmem:[%s0 + $0x68] sm:$0x3]
    %v103 = vld [vmem:[%s0 + $0x70] sm:$0xff]
    %v104 = vld [vmem:[%s0 + $0x78] sm:$0x3]
    %v105 = vld [vmem:[#allocation2] sm:$0xf]
    %v106 = vld [vmem:[#allocation2 + $0x4] sm:$0xf]
    %v107 = vld [vmem:[#allocation2 + $0x8] sm:$0xf]
    %v108 = vld [vmem:[#allocation2 + $0xc] sm:$0xf]
    %v109 = vld [vmem:[#allocation2 + $0x10] sm:$0xf]
    %v110 = vld [vmem:[#allocation2 + $0x14] sm:$0xf]
    %v111 = vpack.c.bf16 %v91, %v89
    %v112 = vpack.c.bf16 %v95, %v93
    %v113 = vpack.c.bf16 %v99, %v97
    %v114 = vpack.c.bf16 %v103, %v101
    %vm131 = vcmask 1046528
    %v132 = vrot.slane %v89, 1
    %v133 = vrot.slane %v90, 1
    %v134 = vsel %vm131, %v132, %v133
    %v135 = vrot.slane %v91, 1
    %v136 = vrot.slane %v92, 1
    %v137 = vsel %vm131, %v135, %v136
    %v138 = vrot.slane %v93, 1
    %v139 = vrot.slane %v94, 1
    %v140 = vsel %vm131, %v138, %v139
    %v141 = vrot.slane %v95, 1
    %v142 = vrot.slane %v96, 1
    %v143 = vsel %vm131, %v141, %v142
    %v144 = vrot.slane %v97, 1
    %v145 = vrot.slane %v98, 1
    %v146 = vsel %vm131, %v144, %v145
    %v147 = vrot.slane %v99, 1
    %v148 = vrot.slane %v100, 1
    %v149 = vsel %vm131, %v147, %v148
    %v150 = vrot.slane %v101, 1
    %v151 = vrot.slane %v102, 1
    %v152 = vsel %vm131, %v150, %v151
    %v153 = vrot.slane %v103, 1
    %v154 = vrot.slane %v104, 1
    %v155 = vsel %vm131, %v153, %v154
    %v164 = vpack.c.bf16 %v137, %v134
    %v165 = vpack.c.bf16 %v143, %v140
    %v166 = vpack.c.bf16 %v149, %v146
    %v167 = vpack.c.bf16 %v155, %v152
    %v170 = vunpack.c.l.b16 %v107
    %v171 = vunpack.c.l.b16 %v108
    %v172 = vpack.c.b16 %v171, %v170
    %vm174 = vcmask 130048
    %v176 = vsel %vm174, %v164, 0
    %v179 = vsel %vm174, %v165, 0
    %v182 = vsel %vm174, %v166, 0
    %v185 = vsel %vm174, %v167, 0
    %187 = vmatprep.subr.bf16.mxu0 0
    %188 = vmatpush1.bf16.msra.mxu0 %v172
    %189 = vmatprep.subr.bf16.mxu0 0
    %190 = vmatpush1.bf16.msra.mxu0 0
    %191 = vmatprep.subr.bf16.mxu0 0
    %192 = vmatpush1.bf16.msra.mxu0 0
    %193 = vmatprep.subr.bf16.mxu0 0
    %194 = vmatpush1.bf16.msra.mxu0 0
    %195 = vmatprep.subr.bf16.mxu0 0
    %196 = vmatpush1.bf16.msra.mxu0 0
    %197 = vmatprep.subr.bf16.mxu0 0
    %198 = vmatpush1.bf16.msra.mxu0 0
    %199 = vmatprep.subr.bf16.mxu0 0
    %200 = vmatpush1.bf16.msra.mxu0 0
    %201 = vmatprep.subr.bf16.mxu0 0
    %202 = vmatpush1.bf16.msra.mxu0 0
    %203 = vmatprep.subr.bf16.mxu0 0
    %204 = vmatpush1.bf16.msra.mxu0 0
    %205 = vmatprep.subr.bf16.mxu0 0
    %206 = vmatpush1.bf16.msra.mxu0 0
    %207 = vmatprep.subr.bf16.mxu0 0
    %208 = vmatpush1.bf16.msra.mxu0 0
    %209 = vmatprep.subr.bf16.mxu0 0
    %210 = vmatpush1.bf16.msra.mxu0 0
    %211 = vmatprep.subr.bf16.mxu0 0
    %212 = vmatpush1.bf16.msra.mxu0 0
    %213 = vmatprep.subr.bf16.mxu0 0
    %214 = vmatpush1.bf16.msra.mxu0 0
    %215 = vmatprep.subr.bf16.mxu0 0
    %216 = vmatpush1.bf16.msra.mxu0 0
    %217 = vmatprep.subr.bf16.mxu0 0
    %218 = vmatpush1.bf16.msra.mxu0 0
    %219 = vmatprep.mubr.bf16.mxu0 0
    %220 = vmatmul.mubr.bf16.gmra.mrb[0].mxu0 %v176
    %v221 = vpop.f32.mrb[0].mxu0
    %v222 = vadd.f32 0.0, %v221
    %v223 = vpop.f32.mrb[0].mxu0
    %v224 = vpop.f32.mrb[0].mxu0
    %v225 = vadd.f32 0.0, %v224
    %v226 = vpop.f32.mrb[0].mxu0
    %227 = vmatprep.mubr.bf16.mxu0 0
    %228 = vmatmul.mubr.bf16.gmra.mrb[0].mxu0 %v179
    %v229 = vpop.f32.mrb[0].mxu0
    %v230 = vadd.f32 0.0, %v229
    %v231 = vpop.f32.mrb[0].mxu0
    %v232 = vpop.f32.mrb[0].mxu0
    %v233 = vadd.f32 0.0, %v232
    %v234 = vpop.f32.mrb[0].mxu0
    %235 = vmatprep.mubr.bf16.mxu0 0
    %236 = vmatmul.mubr.bf16.gmra.mrb[0].mxu0 %v182
    %v237 = vpop.f32.mrb[0].mxu0
    %v238 = vadd.f32 0.0, %v237
    %v239 = vpop.f32.mrb[0].mxu0
    %v240 = vpop.f32.mrb[0].mxu0
    %v241 = vadd.f32 0.0, %v240
    %v242 = vpop.f32.mrb[0].mxu0
    %243 = vmatprep.mubr.bf16.mxu0 0
    %244 = vmatmul.mubr.bf16.gmra.mrb[0].mxu0 %v185
    %v245 = vpop.f32.mrb[0].mxu0
    %v246 = vadd.f32 0.0, %v245
    %v247 = vpop.f32.mrb[0].mxu0
    %v248 = vpop.f32.mrb[0].mxu0
    %v249 = vadd.f32 0.0, %v248
    %v250 = vpop.f32.mrb[0].mxu0
    %251 = vdwg.mxu0
    %v254 = vunpack.c.l.b16 %v105
    %v255 = vunpack.c.l.b16 %v106
    %v256 = vpack.c.b16 %v255, %v254
    %v259 = vsel %vm174, %v111, 0
    %v262 = vsel %vm174, %v112, 0
    %v265 = vsel %vm174, %v113, 0
    %v268 = vsel %vm174, %v114, 0
    %270 = vmatprep.subr.bf16.mxu0 0
    %271 = vmatpush1.bf16.msra.mxu0 %v256
    %272 = vmatprep.subr.bf16.mxu0 0
    %273 = vmatpush1.bf16.msra.mxu0 0
    %274 = vmatprep.subr.bf16.mxu0 0
    %275 = vmatpush1.bf16.msra.mxu0 0
    %276 = vmatprep.subr.bf16.mxu0 0
    %277 = vmatpush1.bf16.msra.mxu0 0
    %278 = vmatprep.subr.bf16.mxu0 0
    %279 = vmatpush1.bf16.msra.mxu0 0
    %280 = vmatprep.subr.bf16.mxu0 0
    %281 = vmatpush1.bf16.msra.mxu0 0
    %282 = vmatprep.subr.bf16.mxu0 0
    %283 = vmatpush1.bf16.msra.mxu0 0
    %284 = vmatprep.subr.bf16.mxu0 0
    %285 = vmatpush1.bf16.msra.mxu0 0
    %286 = vmatprep.subr.bf16.mxu0 0
    %287 = vmatpush1.bf16.msra.mxu0 0
    %288 = vmatprep.subr.bf16.mxu0 0
    %289 = vmatpush1.bf16.msra.mxu0 0
    %290 = vmatprep.subr.bf16.mxu0 0
    %291 = vmatpush1.bf16.msra.mxu0 0
    %292 = vmatprep.subr.bf16.mxu0 0
    %293 = vmatpush1.bf16.msra.mxu0 0
    %294 = vmatprep.subr.bf16.mxu0 0
    %295 = vmatpush1.bf16.msra.mxu0 0
    %296 = vmatprep.subr.bf16.mxu0 0
    %297 = vmatpush1.bf16.msra.mxu0 0
    %298 = vmatprep.subr.bf16.mxu0 0
    %299 = vmatpush1.bf16.msra.mxu0 0
    %300 = vmatprep.subr.bf16.mxu0 0
    %301 = vmatpush1.bf16.msra.mxu0 0
    %302 = vmatprep.mubr.bf16.mxu0 0
    %303 = vmatmul.mubr.bf16.gmra.mrb[0].mxu0 %v259
    %v304 = vpop.f32.mrb[0].mxu0
    %v305 = vadd.f32 %v222, %v304
    %v306 = vpop.f32.mrb[0].mxu0
    %v307 = vpop.f32.mrb[0].mxu0
    %v308 = vadd.f32 %v225, %v307
    %v309 = vpop.f32.mrb[0].mxu0
    %310 = vmatprep.mubr.bf16.mxu0 0
    %311 = vmatmul.mubr.bf16.gmra.mrb[0].mxu0 %v262
    %v312 = vpop.f32.mrb[0].mxu0
    %v313 = vadd.f32 %v230, %v312
    %v314 = vpop.f32.mrb[0].mxu0
    %v315 = vpop.f32.mrb[0].mxu0
    %v316 = vadd.f32 %v233, %v315
    %v317 = vpop.f32.mrb[0].mxu0
    %318 = vmatprep.mubr.bf16.mxu0 0
    %319 = vmatmul.mubr.bf16.gmra.mrb[0].mxu0 %v265
    %v320 = vpop.f32.mrb[0].mxu0
    %v321 = vadd.f32 %v238, %v320
    %v322 = vpop.f32.mrb[0].mxu0
    %v323 = vpop.f32.mrb[0].mxu0
    %v324 = vadd.f32 %v241, %v323
    %v325 = vpop.f32.mrb[0].mxu0
    %326 = vmatprep.mubr.bf16.mxu0 0
    %327 = vmatmul.mubr.bf16.gmra.mrb[0].mxu0 %v268
    %v328 = vpop.f32.mrb[0].mxu0
    %v329 = vadd.f32 %v246, %v328
    %v330 = vpop.f32.mrb[0].mxu0
    %v331 = vpop.f32.mrb[0].mxu0
    %v332 = vadd.f32 %v249, %v331
    %v333 = vpop.f32.mrb[0].mxu0
    %334 = vdwg.mxu0
    %vm335 = vcmask 1045504
    %v336 = vrot.slane %v89, 2
    %v337 = vrot.slane %v90, 2
    %v338 = vsel %vm335, %v336, %v337
    %v339 = vrot.slane %v91, 2
    %v340 = vrot.slane %v92, 2
    %v341 = vsel %vm335, %v339, %v340
    %v342 = vrot.slane %v93, 2
    %v343 = vrot.slane %v94, 2
    %v344 = vsel %vm335, %v342, %v343
    %v345 = vrot.slane %v95, 2
    %v346 = vrot.slane %v96, 2
    %v347 = vsel %vm335, %v345, %v346
    %v348 = vrot.slane %v97, 2
    %v349 = vrot.slane %v98, 2
    %v350 = vsel %vm335, %v348, %v349
    %v351 = vrot.slane %v99, 2
    %v352 = vrot.slane %v100, 2
    %v353 = vsel %vm335, %v351, %v352
    %v354 = vrot.slane %v101, 2
    %v355 = vrot.slane %v102, 2
    %v356 = vsel %vm335, %v354, %v355
    %v357 = vrot.slane %v103, 2
    %v358 = vrot.slane %v104, 2
    %v359 = vsel %vm335, %v357, %v358
    %v368 = vpack.c.bf16 %v341, %v338
    %v369 = vpack.c.bf16 %v347, %v344
    %v370 = vpack.c.bf16 %v353, %v350
    %v371 = vpack.c.bf16 %v359, %v356
    %v374 = vunpack.c.l.b16 %v109
    %v375 = vunpack.c.l.b16 %v110
    %v376 = vpack.c.b16 %v375, %v374
    %v379 = vsel %vm174, %v368, 0
    %v382 = vsel %vm174, %v369, 0
    %v385 = vsel %vm174, %v370, 0
    %v388 = vsel %vm174, %v371, 0
    %390 = vmatprep.subr.bf16.mxu0 0
    %391 = vmatpush1.bf16.msra.mxu0 %v376
    %392 = vmatprep.subr.bf16.mxu0 0
    %393 = vmatpush1.bf16.msra.mxu0 0
    %394 = vmatprep.subr.bf16.mxu0 0
    %395 = vmatpush1.bf16.msra.mxu0 0
    %396 = vmatprep.subr.bf16.mxu0 0
    %397 = vmatpush1.bf16.msra.mxu0 0
    %398 = vmatprep.subr.bf16.mxu0 0
    %399 = vmatpush1.bf16.msra.mxu0 0
    %400 = vmatprep.subr.bf16.mxu0 0
    %401 = vmatpush1.bf16.msra.mxu0 0
    %402 = vmatprep.subr.bf16.mxu0 0
    %403 = vmatpush1.bf16.msra.mxu0 0
    %404 = vmatprep.subr.bf16.mxu0 0
    %405 = vmatpush1.bf16.msra.mxu0 0
    %406 = vmatprep.subr.bf16.mxu0 0
    %407 = vmatpush1.bf16.msra.mxu0 0
    %408 = vmatprep.subr.bf16.mxu0 0
    %409 = vmatpush1.bf16.msra.mxu0 0
    %410 = vmatprep.subr.bf16.mxu0 0
    %411 = vmatpush1.bf16.msra.mxu0 0
    %412 = vmatprep.subr.bf16.mxu0 0
    %413 = vmatpush1.bf16.msra.mxu0 0
    %414 = vmatprep.subr.bf16.mxu0 0
    %415 = vmatpush1.bf16.msra.mxu0 0
    %416 = vmatprep.subr.bf16.mxu0 0
    %417 = vmatpush1.bf16.msra.mxu0 0
    %418 = vmatprep.subr.bf16.mxu0 0
    %419 = vmatpush1.bf16.msra.mxu0 0
    %420 = vmatprep.subr.bf16.mxu0 0
    %421 = vmatpush1.bf16.msra.mxu0 0
    %422 = vmatprep.mubr.bf16.mxu0 0
    %423 = vmatmul.mubr.bf16.gmra.mrb[0].mxu0 %v379
    %v424 = vpop.f32.mrb[0].mxu0
    %v425 = vadd.f32 0.0, %v424
    %v426 = vpop.f32.mrb[0].mxu0
    %v427 = vpop.f32.mrb[0].mxu0
    %v428 = vadd.f32 0.0, %v427
    %v429 = vpop.f32.mrb[0].mxu0
    %430 = vmatprep.mubr.bf16.mxu0 0
    %431 = vmatmul.mubr.bf16.gmra.mrb[0].mxu0 %v382
    %v432 = vpop.f32.mrb[0].mxu0
    %v433 = vadd.f32 0.0, %v432
    %v434 = vpop.f32.mrb[0].mxu0
    %v435 = vpop.f32.mrb[0].mxu0
    %v436 = vadd.f32 0.0, %v435
    %v437 = vpop.f32.mrb[0].mxu0
    %438 = vmatprep.mubr.bf16.mxu0 0
    %439 = vmatmul.mubr.bf16.gmra.mrb[0].mxu0 %v385
    %v440 = vpop.f32.mrb[0].mxu0
    %v441 = vadd.f32 0.0, %v440
    %v442 = vpop.f32.mrb[0].mxu0
    %v443 = vpop.f32.mrb[0].mxu0
    %v444 = vadd.f32 0.0, %v443
    %v445 = vpop.f32.mrb[0].mxu0
    %446 = vmatprep.mubr.bf16.mxu0 0
    %447 = vmatmul.mubr.bf16.gmra.mrb[0].mxu0 %v388
    %v448 = vpop.f32.mrb[0].mxu0
    %v449 = vadd.f32 0.0, %v448
    %v450 = vpop.f32.mrb[0].mxu0
    %v451 = vpop.f32.mrb[0].mxu0
    %v452 = vadd.f32 0.0, %v451
    %v453 = vpop.f32.mrb[0].mxu0
    %454 = vdwg.mxu0
    %v455 = vadd.f32 %v305, %v425
    %v456 = vadd.f32 %v308, %v428
    %v457 = vadd.f32 %v313, %v433
    %v458 = vadd.f32 %v316, %v436
    %v459 = vadd.f32 %v321, %v441
    %v460 = vadd.f32 %v324, %v444
    %v461 = vadd.f32 %v329, %v449
    %v462 = vadd.f32 %v332, %v452
    %v463 = vld [vmem:[#allocation5] sm:$0x1]
    %v465 = vlaneseq
    %v466 = vshrl.u32 %v465, 7
    %v467 = vsub.s32 0, %v466
    %v468 = vrot.slane %v463, %v467
    %v470 = vadd.f32 %v455, %v468
    %v471 = vadd.f32 %v456, %v468
    %v472 = vadd.f32 %v457, %v468
    %v473 = vadd.f32 %v458, %v468
    %v474 = vadd.f32 %v459, %v468
    %v475 = vadd.f32 %v460, %v468
    %v476 = vadd.f32 %v461, %v468
    %v477 = vadd.f32 %v462, %v468
    %v478 = vmax.f32 %v470, 0.0
    %v479 = vmax.f32 %v471, 0.0
    %v480 = vmax.f32 %v472, 0.0
    %v481 = vmax.f32 %v473, 0.0
    %v482 = vmax.f32 %v474, 0.0
    %v483 = vmax.f32 %v475, 0.0
    %v484 = vmax.f32 %v476, 0.0
    %v485 = vmax.f32 %v477, 0.0
    %v486 = vld [vmem:[%s3] sm:$0xff]
    %v487 = vld [vmem:[%s3 + $0x8] sm:$0xf]
    %v488 = vld [vmem:[%s3 + $0xc] sm:$0xff]
    %v489 = vld [vmem:[%s3 + $0x14] sm:$0xf]
    %v490 = vld [vmem:[%s3 + $0x18] sm:$0xff]
    %v491 = vld [vmem:[%s3 + $0x20] sm:$0xf]
    %v492 = vld [vmem:[%s3 + $0x24] sm:$0xff]
    %v493 = vld [vmem:[%s3 + $0x2c] sm:$0xf]
    %v494 = vld [vmem:[%s3 + $0x30] sm:$0xff]
    %v495 = vld [vmem:[%s3 + $0x38] sm:$0xf]
    %v496 = vld [vmem:[%s3 + $0x3c] sm:$0xff]
    %v497 = vld [vmem:[%s3 + $0x44] sm:$0xf]
    %v498 = vld [vmem:[%s3 + $0x48] sm:$0xff]
    %v499 = vld [vmem:[%s3 + $0x50] sm:$0xf]
    %v500 = vld [vmem:[%s3 + $0x54] sm:$0xff]
    %v501 = vld [vmem:[%s3 + $0x5c] sm:$0xf]
    %v502 = vld [vmem:[%s3 + $0x60] sm:$0xff]
    %v503 = vld [vmem:[%s3 + $0x68] sm:$0xf]
    %v504 = vld [vmem:[%s3 + $0x6c] sm:$0xff]
    %v505 = vld [vmem:[%s3 + $0x74] sm:$0xf]
    %v506 = vld [vmem:[%s3 + $0x78] sm:$0xff]
    %v507 = vld [vmem:[%s3 + $0x80] sm:$0xf]
    %v508 = vld [vmem:[%s3 + $0x84] sm:$0xff]
    %v509 = vld [vmem:[%s3 + $0x8c] sm:$0xf]
    %v510 = vld [vmem:[%s3 + $0x90] sm:$0xff]
    %v511 = vld [vmem:[%s3 + $0x98] sm:$0xf]
    %v512 = vld [vmem:[%s3 + $0x9c] sm:$0xff]
    %v513 = vld [vmem:[%s3 + $0xa4] sm:$0xf]
    %v514 = vld [vmem:[%s3 + $0xa8] sm:$0xff]
    %v515 = vld [vmem:[%s3 + $0xb0] sm:$0xf]
    %v516 = vld [vmem:[%s3 + $0xb4] sm:$0xff]
    %v517 = vld [vmem:[%s3 + $0xbc] sm:$0xf]
    %v518 = vld [vmem:[%s5] sm:$0xff]
    %v519 = vld [vmem:[%s5 + $0x8] sm:$0xf]
    %v520 = vld [vmem:[%s5 + $0xc] sm:$0xff]
    %v521 = vld [vmem:[%s5 + $0x14] sm:$0xf]
    %v522 = vld [vmem:[%s5 + $0x18] sm:$0xff]
    %v523 = vld [vmem:[%s5 + $0x20] sm:$0xf]
    %v524 = vld [vmem:[%s5 + $0x24] sm:$0xff]
    %v525 = vld [vmem:[%s5 + $0x2c] sm:$0xf]
    %v526 = vld [vmem:[%s5 + $0x30] sm:$0xff]
    %v527 = vld [vmem:[%s5 + $0x38] sm:$0xf]
    %v528 = vld [vmem:[%s5 + $0x3c] sm:$0xff]
    %v529 = vld [vmem:[%s5 + $0x44] sm:$0xf]
    %v530 = vld [vmem:[%s5 + $0x48] sm:$0xff]
    %v531 = vld [vmem:[%s5 + $0x50] sm:$0xf]
    %v532 = vld [vmem:[%s5 + $0x54] sm:$0xff]
    %v533 = vld [vmem:[%s5 + $0x5c] sm:$0xf]
    %v534 = vld [vmem:[%s5 + $0x60] sm:$0xff]
    %v535 = vld [vmem:[%s5 + $0x68] sm:$0xf]
    %v536 = vld [vmem:[%s5 + $0x6c] sm:$0xff]
    %v537 = vld [vmem:[%s5 + $0x74] sm:$0xf]
    %v538 = vld [vmem:[%s5 + $0x78] sm:$0xff]
    %v539 = vld [vmem:[%s5 + $0x80] sm:$0xf]
    %v540 = vld [vmem:[%s5 + $0x84] sm:$0xff]
    %v541 = vld [vmem:[%s5 + $0x8c] sm:$0xf]
    %v542 = vld [vmem:[%s5 + $0x90] sm:$0xff]
    %v543 = vld [vmem:[%s5 + $0x98] sm:$0xf]
    %v544 = vld [vmem:[%s5 + $0x9c] sm:$0xff]
    %v545 = vld [vmem:[%s5 + $0xa4] sm:$0xf]
    %v546 = vld [vmem:[%s5 + $0xa8] sm:$0xff]
    %v547 = vld [vmem:[%s5 + $0xb0] sm:$0xf]
    %v548 = vld [vmem:[%s5 + $0xb4] sm:$0xff]
    %v549 = vld [vmem:[%s5 + $0xbc] sm:$0xf]
    %v550 = vld [vmem:[%s6] sm:$0x7]
    %vm551 = vcmask 254976
    %v552 = vsel %vm551, %v478, -inf
    %v553 = vrot.slane %v552, 4
    %v554 = vmax.f32 %v552, %v553
    %v555 = vrot.slane %v554, 2
    %v556 = vmax.f32 %v554, %v555
    %v557 = vrot.slane %v556, 1
    %v558 = vmax.f32 %v556, %v557
    %v559 = vsel %vm551, %v479, -inf
    %v560 = vrot.slane %v559, 4
    %v561 = vmax.f32 %v559, %v560
    %v562 = vrot.slane %v561, 2
    %v563 = vmax.f32 %v561, %v562
    %v564 = vrot.slane %v563, 1
    %v565 = vmax.f32 %v563, %v564
    %v566 = vsel %vm551, %v480, -inf
    %v567 = vrot.slane %v566, 4
    %v568 = vmax.f32 %v566, %v567
    %v569 = vrot.slane %v568, 2
    %v570 = vmax.f32 %v568, %v569
    %v571 = vrot.slane %v570, 1
    %v572 = vmax.f32 %v570, %v571
    %v573 = vsel %vm551, %v481, -inf
    %v574 = vrot.slane %v573, 4
    %v575 = vmax.f32 %v573, %v574
    %v576 = vrot.slane %v575, 2
    %v577 = vmax.f32 %v575, %v576
    %v578 = vrot.slane %v577, 1
    %v579 = vmax.f32 %v577, %v578
    %v580 = vsel %vm551, %v482, -inf
    %v581 = vrot.slane %v580, 4
    %v582 = vmax.f32 %v580, %v581
    %v583 = vrot.slane %v582, 2
    %v584 = vmax.f32 %v582, %v583
    %v585 = vrot.slane %v584, 1
    %v586 = vmax.f32 %v584, %v585
    %v587 = vsel %vm551, %v483, -inf
    %v588 = vrot.slane %v587, 4
    %v589 = vmax.f32 %v587, %v588
    %v590 = vrot.slane %v589, 2
    %v591 = vmax.f32 %v589, %v590
    %v592 = vrot.slane %v591, 1
    %v593 = vmax.f32 %v591, %v592
    %v594 = vsel %vm551, %v484, -inf
    %v595 = vrot.slane %v594, 4
    %v596 = vmax.f32 %v594, %v595
    %v597 = vrot.slane %v596, 2
    %v598 = vmax.f32 %v596, %v597
    %v599 = vrot.slane %v598, 1
    %v600 = vmax.f32 %v598, %v599
    %v601 = vsel %vm551, %v485, -inf
    %v602 = vrot.slane %v601, 4
    %v603 = vmax.f32 %v601, %v602
    %v604 = vrot.slane %v603, 2
    %v605 = vmax.f32 %v603, %v604
    %v606 = vrot.slane %v605, 1
    %v607 = vmax.f32 %v605, %v606
    %v608 = vpack.c.bf16 %v558, %v558
    %v609 = vpack.c.bf16 %v565, %v565
    %v610 = vpack.c.bf16 %v572, %v572
    %v611 = vpack.c.bf16 %v579, %v579
    %v612 = vpack.c.bf16 %v586, %v586
    %v613 = vpack.c.bf16 %v593, %v593
    %v614 = vpack.c.bf16 %v600, %v600
    %v615 = vpack.c.bf16 %v607, %v607
    %vm616 = vcmask 257026
    %v617 = vsel %vm616, %v478, -inf
    %v618 = vrot.slane %v617, 4
    %v619 = vmax.f32 %v617, %v618
    %v620 = vrot.slane %v619, 2
    %v621 = vmax.f32 %v619, %v620
    %v622 = vrot.slane %v621, 1
    %v623 = vmax.f32 %v621, %v622
    %v624 = vsel %vm616, %v479, -inf
    %v625 = vrot.slane %v624, 4
    %v626 = vmax.f32 %v624, %v625
    %v627 = vrot.slane %v626, 2
    %v628 = vmax.f32 %v626, %v627
    %v629 = vrot.slane %v628, 1
    %v630 = vmax.f32 %v628, %v629
    %v631 = vsel %vm616, %v480, -inf
    %v632 = vrot.slane %v631, 4
    %v633 = vmax.f32 %v631, %v632
    %v634 = vrot.slane %v633, 2
    %v635 = vmax.f32 %v633, %v634
    %v636 = vrot.slane %v635, 1
    %v637 = vmax.f32 %v635, %v636
    %v638 = vsel %vm616, %v481, -inf
    %v639 = vrot.slane %v638, 4
    %v640 = vmax.f32 %v638, %v639
    %v641 = vrot.slane %v640, 2
    %v642 = vmax.f32 %v640, %v641
    %v643 = vrot.slane %v642, 1
    %v644 = vmax.f32 %v642, %v643
    %v645 = vsel %vm616, %v482, -inf
    %v646 = vrot.slane %v645, 4
    %v647 = vmax.f32 %v645, %v646
    %v648 = vrot.slane %v647, 2
    %v649 = vmax.f32 %v647, %v648
    %v650 = vrot.slane %v649, 1
    %v651 = vmax.f32 %v649, %v650
    %v652 = vsel %vm616, %v483, -inf
    %v653 = vrot.slane %v652, 4
    %v654 = vmax.f32 %v652, %v653
    %v655 = vrot.slane %v654, 2
    %v656 = vmax.f32 %v654, %v655
    %v657 = vrot.slane %v656, 1
    %v658 = vmax.f32 %v656, %v657
    %v659 = vsel %vm616, %v484, -inf
    %v660 = vrot.slane %v659, 4
    %v661 = vmax.f32 %v659, %v660
    %v662 = vrot.slane %v661, 2
    %v663 = vmax.f32 %v661, %v662
    %v664 = vrot.slane %v663, 1
    %v665 = vmax.f32 %v663, %v664
    %v666 = vsel %vm616, %v485, -inf
    %v667 = vrot.slane %v666, 4
    %v668 = vmax.f32 %v666, %v667
    %v669 = vrot.slane %v668, 2
    %v670 = vmax.f32 %v668, %v669
    %v671 = vrot.slane %v670, 1
    %v672 = vmax.f32 %v670, %v671
    %v673 = vpack.c.bf16 %v623, %v623
    %v674 = vpack.c.bf16 %v630, %v630
    %v675 = vpack.c.bf16 %v637, %v637
    %v676 = vpack.c.bf16 %v644, %v644
    %v677 = vpack.c.bf16 %v651, %v651
    %v678 = vpack.c.bf16 %v658, %v658
    %v679 = vpack.c.bf16 %v665, %v665
    %v680 = vpack.c.bf16 %v672, %v672
    %v689 = vunpack.c.l.b16 %v673
    %v690 = vunpack.c.l.b16 %v674
    %v691 = vunpack.c.l.b16 %v675
    %v692 = vunpack.c.l.b16 %v676
    %v693 = vunpack.c.l.b16 %v677
    %v694 = vunpack.c.l.b16 %v678
    %v695 = vunpack.c.l.b16 %v679
    %v696 = vunpack.c.l.b16 %v680
    %vm697 = vcmask 1041409
    %v698 = vsel %vm697, %v690, %v689
    %vm699 = vcmask 1042434
    %v700 = vsel %vm699, %v691, %v698
    %vm701 = vcmask 1043459
    %v702 = vsel %vm701, %v692, %v700
    %vm703 = vcmask 1044484
    %v704 = vsel %vm703, %v693, %v702
    %vm705 = vcmask 1045509
    %v706 = vsel %vm705, %v694, %v704
    %vm707 = vcmask 1046534
    %v708 = vsel %vm707, %v695, %v706
    %vm709 = vcmask 1047559
    %v710 = vsel %vm709, %v696, %v708
    %v711 = vpack.c.b16 %v710, %v710
    %v720 = vunpack.c.l.b16 %v494
    %v721 = vunpack.c.h.b16 %v494
    %v722 = vunpack.c.l.b16 %v495
    %v723 = vunpack.c.l.b16 %v496
    %v724 = vunpack.c.h.b16 %v496
    %v725 = vunpack.c.l.b16 %v497
    %v726 = vunpack.c.l.b16 %v498
    %v727 = vunpack.c.h.b16 %v498
    %v728 = vunpack.c.l.b16 %v499
    %v729 = vunpack.c.l.b16 %v500
    %v730 = vunpack.c.h.b16 %v500
    %v731 = vunpack.c.l.b16 %v501
    %v732 = vpack.c.b16 %v723, %v720
    %v733 = vpack.c.b16 %v724, %v721
    %v734 = vpack.c.b16 %v725, %v722
    %v735 = vpack.c.b16 %v729, %v726
    %v736 = vpack.c.b16 %v730, %v727
    %v737 = vpack.c.b16 %v731, %v728
    %vm744 = vcmask 261120
    %v746 = vsel %vm744, %v711, 0
    %748 = vmatprep.subr.bf16.mxu0 %v733
    %749 = vmatpush1.bf16.msra.mxu0 %v732
    %750 = vmatprep.subr.bf16.mxu0 %v736
    %751 = vmatpush1.bf16.msra.mxu0 %v735
    %752 = vmatprep.subr.bf16.mxu0 0
    %753 = vmatpush1.bf16.msra.mxu0 0
    %754 = vmatprep.subr.bf16.mxu0 0
    %755 = vmatpush1.bf16.msra.mxu0 0
    %756 = vmatprep.subr.bf16.mxu0 0
    %757 = vmatpush1.bf16.msra.mxu0 0
    %758 = vmatprep.subr.bf16.mxu0 0
    %759 = vmatpush1.bf16.msra.mxu0 0
    %760 = vmatprep.subr.bf16.mxu0 0
    %761 = vmatpush1.bf16.msra.mxu0 0
    %762 = vmatprep.subr.bf16.mxu0 0
    %763 = vmatpush1.bf16.msra.mxu0 0
    %764 = vmatprep.subr.bf16.mxu0 0
    %765 = vmatpush1.bf16.msra.mxu0 0
    %766 = vmatprep.subr.bf16.mxu0 0
    %767 = vmatpush1.bf16.msra.mxu0 0
    %768 = vmatprep.subr.bf16.mxu0 0
    %769 = vmatpush1.bf16.msra.mxu0 0
    %770 = vmatprep.subr.bf16.mxu0 0
    %771 = vmatpush1.bf16.msra.mxu0 0
    %772 = vmatprep.subr.bf16.mxu0 0
    %773 = vmatpush1.bf16.msra.mxu0 0
    %774 = vmatprep.subr.bf16.mxu0 0
    %775 = vmatpush1.bf16.msra.mxu0 0
    %776 = vmatprep.subr.bf16.mxu0 0
    %777 = vmatpush1.bf16.msra.mxu0 0
    %778 = vmatprep.subr.bf16.mxu0 0
    %779 = vmatpush1.bf16.msra.mxu0 0
    %780 = vmatprep.mubr.bf16.mxu0 0
    %781 = vmatmul.mubr.bf16.gmra.mrb[0].mxu0 %v746
    %v782 = vpop.f32.mrb[0].mxu0
    %v783 = vadd.f32 0.0, %v782
    %v784 = vpop.f32.mrb[0].mxu0
    %v785 = vadd.f32 0.0, %v784
    %v786 = vpop.f32.mrb[0].mxu0
    %v787 = vpop.f32.mrb[0].mxu0
    %788 = vdwg.mxu0
    %789 = vmatprep.subr.bf16.mxu0 0
    %790 = vmatpush1.bf16.msra.mxu0 %v734
    %791 = vmatprep.subr.bf16.mxu0 0
    %792 = vmatpush1.bf16.msra.mxu0 %v737
    %793 = vmatprep.subr.bf16.mxu0 0
    %794 = vmatpush1.bf16.msra.mxu0 0
    %795 = vmatprep.subr.bf16.mxu0 0
    %796 = vmatpush1.bf16.msra.mxu0 0
    %797 = vmatprep.subr.bf16.mxu0 0
    %798 = vmatpush1.bf16.msra.mxu0 0
    %799 = vmatprep.subr.bf16.mxu0 0
    %800 = vmatpush1.bf16.msra.mxu0 0
    %801 = vmatprep.subr.bf16.mxu0 0
    %802 = vmatpush1.bf16.msra.mxu0 0
    %803 = vmatprep.subr.bf16.mxu0 0
    %804 = vmatpush1.bf16.msra.mxu0 0
    %805 = vmatprep.subr.bf16.mxu0 0
    %806 = vmatpush1.bf16.msra.mxu0 0
    %807 = vmatprep.subr.bf16.mxu0 0
    %808 = vmatpush1.bf16.msra.mxu0 0
    %809 = vmatprep.subr.bf16.mxu0 0
    %810 = vmatpush1.bf16.msra.mxu0 0
    %811 = vmatprep.subr.bf16.mxu0 0
    %812 = vmatpush1.bf16.msra.mxu0 0
    %813 = vmatprep.subr.bf16.mxu0 0
    %814 = vmatpush1.bf16.msra.mxu0 0
    %815 = vmatprep.subr.bf16.mxu0 0
    %816 = vmatpush1.bf16.msra.mxu0 0
    %817 = vmatprep.subr.bf16.mxu0 0
    %818 = vmatpush1.bf16.msra.mxu0 0
    %819 = vmatprep.subr.bf16.mxu0 0
    %820 = vmatpush1.bf16.msra.mxu0 0
    %821 = vmatprep.mubr.bf16.mxu0 0
    %822 = vmatmul.mubr.bf16.gmra.mrb[0].mxu0 %v746
    %v823 = vpop.f32.mrb[0].mxu0
    %v824 = vadd.f32 0.0, %v823
    %v825 = vpop.f32.mrb[0].mxu0
    %v826 = vpop.f32.mrb[0].mxu0
    %v827 = vpop.f32.mrb[0].mxu0
    %828 = vdwg.mxu0
    %v837 = vunpack.c.l.b16 %v608
    %v838 = vunpack.c.l.b16 %v609
    %v839 = vunpack.c.l.b16 %v610
    %v840 = vunpack.c.l.b16 %v611
    %v841 = vunpack.c.l.b16 %v612
    %v842 = vunpack.c.l.b16 %v613
    %v843 = vunpack.c.l.b16 %v614
    %v844 = vunpack.c.l.b16 %v615
    %v845 = vsel %vm697, %v838, %v837
    %v846 = vsel %vm699, %v839, %v845
    %v847 = vsel %vm701, %v840, %v846
    %v848 = vsel %vm703, %v841, %v847
    %v849 = vsel %vm705, %v842, %v848
    %v850 = vsel %vm707, %v843, %v849
    %v851 = vsel %vm709, %v844, %v850
    %v852 = vpack.c.b16 %v851, %v851
    %v861 = vunpack.c.l.b16 %v486
    %v862 = vunpack.c.h.b16 %v486
    %v863 = vunpack.c.l.b16 %v487
    %v864 = vunpack.c.l.b16 %v488
    %v865 = vunpack.c.h.b16 %v488
    %v866 = vunpack.c.l.b16 %v489
    %v867 = vunpack.c.l.b16 %v490
    %v868 = vunpack.c.h.b16 %v490
    %v869 = vunpack.c.l.b16 %v491
    %v870 = vunpack.c.l.b16 %v492
    %v871 = vunpack.c.h.b16 %v492
    %v872 = vunpack.c.l.b16 %v493
    %v873 = vpack.c.b16 %v864, %v861
    %v874 = vpack.c.b16 %v865, %v862
    %v875 = vpack.c.b16 %v866, %v863
    %v876 = vpack.c.b16 %v870, %v867
    %v877 = vpack.c.b16 %v871, %v868
    %v878 = vpack.c.b16 %v872, %v869
    %v886 = vsel %vm744, %v852, 0
    %888 = vmatprep.subr.bf16.mxu0 %v874
    %889 = vmatpush1.bf16.msra.mxu0 %v873
    %890 = vmatprep.subr.bf16.mxu0 %v877
    %891 = vmatpush1.bf16.msra.mxu0 %v876
    %892 = vmatprep.subr.bf16.mxu0 0
    %893 = vmatpush1.bf16.msra.mxu0 0
    %894 = vmatprep.subr.bf16.mxu0 0
    %895 = vmatpush1.bf16.msra.mxu0 0
    %896 = vmatprep.subr.bf16.mxu0 0
    %897 = vmatpush1.bf16.msra.mxu0 0
    %898 = vmatprep.subr.bf16.mxu0 0
    %899 = vmatpush1.bf16.msra.mxu0 0
    %900 = vmatprep.subr.bf16.mxu0 0
    %901 = vmatpush1.bf16.msra.mxu0 0
    %902 = vmatprep.subr.bf16.mxu0 0
    %903 = vmatpush1.bf16.msra.mxu0 0
    %904 = vmatprep.subr.bf16.mxu0 0
    %905 = vmatpush1.bf16.msra.mxu0 0
    %906 = vmatprep.subr.bf16.mxu0 0
    %907 = vmatpush1.bf16.msra.mxu0 0
    %908 = vmatprep.subr.bf16.mxu0 0
    %909 = vmatpush1.bf16.msra.mxu0 0
    %910 = vmatprep.subr.bf16.mxu0 0
    %911 = vmatpush1.bf16.msra.mxu0 0
    %912 = vmatprep.subr.bf16.mxu0 0
    %913 = vmatpush1.bf16.msra.mxu0 0
    %914 = vmatprep.subr.bf16.mxu0 0
    %915 = vmatpush1.bf16.msra.mxu0 0
    %916 = vmatprep.subr.bf16.mxu0 0
    %917 = vmatpush1.bf16.msra.mxu0 0
    %918 = vmatprep.subr.bf16.mxu0 0
    %919 = vmatpush1.bf16.msra.mxu0 0
    %920 = vmatprep.mubr.bf16.mxu0 0
    %921 = vmatmul.mubr.bf16.gmra.mrb[0].mxu0 %v886
    %v922 = vpop.f32.mrb[0].mxu0
    %v923 = vadd.f32 %v783, %v922
    %v924 = vpop.f32.mrb[0].mxu0
    %v925 = vadd.f32 %v785, %v924
    %v926 = vpop.f32.mrb[0].mxu0
    %v927 = vpop.f32.mrb[0].mxu0
    %928 = vdwg.mxu0
    %929 = vmatprep.subr.bf16.mxu0 0
    %930 = vmatpush1.bf16.msra.mxu0 %v875
    %931 = vmatprep.subr.bf16.mxu0 0
    %932 = vmatpush1.bf16.msra.mxu0 %v878
    %933 = vmatprep.subr.bf16.mxu0 0
    %934 = vmatpush1.bf16.msra.mxu0 0
    %935 = vmatprep.subr.bf16.mxu0 0
    %936 = vmatpush1.bf16.msra.mxu0 0
    %937 = vmatprep.subr.bf16.mxu0 0
    %938 = vmatpush1.bf16.msra.mxu0 0
    %939 = vmatprep.subr.bf16.mxu0 0
    %940 = vmatpush1.bf16.msra.mxu0 0
    %941 = vmatprep.subr.bf16.mxu0 0
    %942 = vmatpush1.bf16.msra.mxu0 0
    %943 = vmatprep.subr.bf16.mxu0 0
    %944 = vmatpush1.bf16.msra.mxu0 0
    %945 = vmatprep.subr.bf16.mxu0 0
    %946 = vmatpush1.bf16.msra.mxu0 0
    %947 = vmatprep.subr.bf16.mxu0 0
    %948 = vmatpush1.bf16.msra.mxu0 0
    %949 = vmatprep.subr.bf16.mxu0 0
    %950 = vmatpush1.bf16.msra.mxu0 0
    %951 = vmatprep.subr.bf16.mxu0 0
    %952 = vmatpush1.bf16.msra.mxu0 0
    %953 = vmatprep.subr.bf16.mxu0 0
    %954 = vmatpush1.bf16.msra.mxu0 0
    %955 = vmatprep.subr.bf16.mxu0 0
    %956 = vmatpush1.bf16.msra.mxu0 0
    %957 = vmatprep.subr.bf16.mxu0 0
    %958 = vmatpush1.bf16.msra.mxu0 0
    %959 = vmatprep.subr.bf16.mxu0 0
    %960 = vmatpush1.bf16.msra.mxu0 0
    %961 = vmatprep.mubr.bf16.mxu0 0
    %962 = vmatmul.mubr.bf16.gmra.mrb[0].mxu0 %v886
    %v963 = vpop.f32.mrb[0].mxu0
    %v964 = vadd.f32 %v824, %v963
    %v965 = vpop.f32.mrb[0].mxu0
    %v966 = vpop.f32.mrb[0].mxu0
    %v967 = vpop.f32.mrb[0].mxu0
    %968 = vdwg.mxu0
    %vm969 = vcmask 259076
    %v970 = vsel %vm969, %v478, -inf
    %v971 = vrot.slane %v970, 4
    %v972 = vmax.f32 %v970, %v971
    %v973 = vrot.slane %v972, 2
    %v974 = vmax.f32 %v972, %v973
    %v975 = vrot.slane %v974, 1
    %v976 = vmax.f32 %v974, %v975
    %v977 = vsel %vm969, %v479, -inf
    %v978 = vrot.slane %v977, 4
    %v979 = vmax.f32 %v977, %v978
    %v980 = vrot.slane %v979, 2
    %v981 = vmax.f32 %v979, %v980
    %v982 = vrot.slane %v981, 1
    %v983 = vmax.f32 %v981, %v982
    %v984 = vsel %vm969, %v480, -inf
    %v985 = vrot.slane %v984, 4
    %v986 = vmax.f32 %v984, %v985
    %v987 = vrot.slane %v986, 2
    %v988 = vmax.f32 %v986, %v987
    %v989 = vrot.slane %v988, 1
    %v990 = vmax.f32 %v988, %v989
    %v991 = vsel %vm969, %v481, -inf
    %v992 = vrot.slane %v991, 4
    %v993 = vmax.f32 %v991, %v992
    %v994 = vrot.slane %v993, 2
    %v995 = vmax.f32 %v993, %v994
    %v996 = vrot.slane %v995, 1
    %v997 = vmax.f32 %v995, %v996
    %v998 = vsel %vm969, %v482, -inf
    %v999 = vrot.slane %v998, 4
    %v1000 = vmax.f32 %v998, %v999
    %v1001 = vrot.slane %v1000, 2
    %v1002 = vmax.f32 %v1000, %v1001
    %v1003 = vrot.slane %v1002, 1
    %v1004 = vmax.f32 %v1002, %v1003
    %v1005 = vsel %vm969, %v483, -inf
    %v1006 = vrot.slane %v1005, 4
    %v1007 = vmax.f32 %v1005, %v1006
    %v1008 = vrot.slane %v1007, 2
    %v1009 = vmax.f32 %v1007, %v1008
    %v1010 = vrot.slane %v1009, 1
    %v1011 = vmax.f32 %v1009, %v1010
    %v1012 = vsel %vm969, %v484, -inf
    %v1013 = vrot.slane %v1012, 4
    %v1014 = vmax.f32 %v1012, %v1013
    %v1015 = vrot.slane %v1014, 2
    %v1016 = vmax.f32 %v1014, %v1015
    %v1017 = vrot.slane %v1016, 1
    %v1018 = vmax.f32 %v1016, %v1017
    %v1019 = vsel %vm969, %v485, -inf
    %v1020 = vrot.slane %v1019, 4
    %v1021 = vmax.f32 %v1019, %v1020
    %v1022 = vrot.slane %v1021, 2
    %v1023 = vmax.f32 %v1021, %v1022
    %v1024 = vrot.slane %v1023, 1
    %v1025 = vmax.f32 %v1023, %v1024
    %v1026 = vpack.c.bf16 %v976, %v976
    %v1027 = vpack.c.bf16 %v983, %v983
    %v1028 = vpack.c.bf16 %v990, %v990
    %v1029 = vpack.c.bf16 %v997, %v997
    %v1030 = vpack.c.bf16 %v1004, %v1004
    %v1031 = vpack.c.bf16 %v1011, %v1011
    %v1032 = vpack.c.bf16 %v1018, %v1018
    %v1033 = vpack.c.bf16 %v1025, %v1025
    %v1042 = vunpack.c.l.b16 %v1026
    %v1043 = vunpack.c.l.b16 %v1027
    %v1044 = vunpack.c.l.b16 %v1028
    %v1045 = vunpack.c.l.b16 %v1029
    %v1046 = vunpack.c.l.b16 %v1030
    %v1047 = vunpack.c.l.b16 %v1031
    %v1048 = vunpack.c.l.b16 %v1032
    %v1049 = vunpack.c.l.b16 %v1033
    %v1050 = vsel %vm697, %v1043, %v1042
    %v1051 = vsel %vm699, %v1044, %v1050
    %v1052 = vsel %vm701, %v1045, %v1051
    %v1053 = vsel %vm703, %v1046, %v1052
    %v1054 = vsel %vm705, %v1047, %v1053
    %v1055 = vsel %vm707, %v1048, %v1054
    %v1056 = vsel %vm709, %v1049, %v1055
    %v1057 = vpack.c.b16 %v1056, %v1056
    %v1066 = vunpack.c.l.b16 %v502
    %v1067 = vunpack.c.h.b16 %v502
    %v1068 = vunpack.c.l.b16 %v503
    %v1069 = vunpack.c.l.b16 %v504
    %v1070 = vunpack.c.h.b16 %v504
    %v1071 = vunpack.c.l.b16 %v505
    %v1072 = vunpack.c.l.b16 %v506
    %v1073 = vunpack.c.h.b16 %v506
    %v1074 = vunpack.c.l.b16 %v507
    %v1075 = vunpack.c.l.b16 %v508
    %v1076 = vunpack.c.h.b16 %v508
    %v1077 = vunpack.c.l.b16 %v509
    %v1078 = vpack.c.b16 %v1069, %v1066
    %v1079 = vpack.c.b16 %v1070, %v1067
    %v1080 = vpack.c.b16 %v1071, %v1068
    %v1081 = vpack.c.b16 %v1075, %v1072
    %v1082 = vpack.c.b16 %v1076, %v1073
    %v1083 = vpack.c.b16 %v1077, %v1074
    %v1091 = vsel %vm744, %v1057, 0
    %1093 = vmatprep.subr.bf16.mxu0 %v1079
    %1094 = vmatpush1.bf16.msra.mxu0 %v1078
    %1095 = vmatprep.subr.bf16.mxu0 %v1082
    %1096 = vmatpush1.bf16.msra.mxu0 %v1081
    %1097 = vmatprep.subr.bf16.mxu0 0
    %1098 = vmatpush1.bf16.msra.mxu0 0
    %1099 = vmatprep.subr.bf16.mxu0 0
    %1100 = vmatpush1.bf16.msra.mxu0 0
    %1101 = vmatprep.subr.bf16.mxu0 0
    %1102 = vmatpush1.bf16.msra.mxu0 0
    %1103 = vmatprep.subr.bf16.mxu0 0
    %1104 = vmatpush1.bf16.msra.mxu0 0
    %1105 = vmatprep.subr.bf16.mxu0 0
    %1106 = vmatpush1.bf16.msra.mxu0 0
    %1107 = vmatprep.subr.bf16.mxu0 0
    %1108 = vmatpush1.bf16.msra.mxu0 0
    %1109 = vmatprep.subr.bf16.mxu0 0
    %1110 = vmatpush1.bf16.msra.mxu0 0
    %1111 = vmatprep.subr.bf16.mxu0 0
    %1112 = vmatpush1.bf16.msra.mxu0 0
    %1113 = vmatprep.subr.bf16.mxu0 0
    %1114 = vmatpush1.bf16.msra.mxu0 0
    %1115 = vmatprep.subr.bf16.mxu0 0
    %1116 = vmatpush1.bf16.msra.mxu0 0
    %1117 = vmatprep.subr.bf16.mxu0 0
    %1118 = vmatpush1.bf16.msra.mxu0 0
    %1119 = vmatprep.subr.bf16.mxu0 0
    %1120 = vmatpush1.bf16.msra.mxu0 0
    %1121 = vmatprep.subr.bf16.mxu0 0
    %1122 = vmatpush1.bf16.msra.mxu0 0
    %1123 = vmatprep.subr.bf16.mxu0 0
    %1124 = vmatpush1.bf16.msra.mxu0 0
    %1125 = vmatprep.mubr.bf16.mxu0 0
    %1126 = vmatmul.mubr.bf16.gmra.mrb[0].mxu0 %v1091
    %v1127 = vpop.f32.mrb[0].mxu0
    %v1128 = vadd.f32 0.0, %v1127
    %v1129 = vpop.f32.mrb[0].mxu0
    %v1130 = vadd.f32 0.0, %v1129
    %v1131 = vpop.f32.mrb[0].mxu0
    %v1132 = vpop.f32.mrb[0].mxu0
    %1133 = vdwg.mxu0
    %1134 = vmatprep.subr.bf16.mxu0 0
    %1135 = vmatpush1.bf16.msra.mxu0 %v1080
    %1136 = vmatprep.subr.bf16.mxu0 0
    %1137 = vmatpush1.bf16.msra.mxu0 %v1083
    %1138 = vmatprep.subr.bf16.mxu0 0
    %1139 = vmatpush1.bf16.msra.mxu0 0
    %1140 = vmatprep.subr.bf16.mxu0 0
    %1141 = vmatpush1.bf16.msra.mxu0 0
    %1142 = vmatprep.subr.bf16.mxu0 0
    %1143 = vmatpush1.bf16.msra.mxu0 0
    %1144 = vmatprep.subr.bf16.mxu0 0
    %1145 = vmatpush1.bf16.msra.mxu0 0
    %1146 = vmatprep.subr.bf16.mxu0 0
    %1147 = vmatpush1.bf16.msra.mxu0 0
    %1148 = vmatprep.subr.bf16.mxu0 0
    %1149 = vmatpush1.bf16.msra.mxu0 0
    %1150 = vmatprep.subr.bf16.mxu0 0
    %1151 = vmatpush1.bf16.msra.mxu0 0
    %1152 = vmatprep.subr.bf16.mxu0 0
    %1153 = vmatpush1.bf16.msra.mxu0 0
    %1154 = vmatprep.subr.bf16.mxu0 0
    %1155 = vmatpush1.bf16.msra.mxu0 0
    %1156 = vmatprep.subr.bf16.mxu0 0
    %1157 = vmatpush1.bf16.msra.mxu0 0
    %1158 = vmatprep.subr.bf16.mxu0 0
    %1159 = vmatpush1.bf16.msra.mxu0 0
    %1160 = vmatprep.subr.bf16.mxu0 0
    %1161 = vmatpush1.bf16.msra.mxu0 0
    %1162 = vmatprep.subr.bf16.mxu0 0
    %1163 = vmatpush1.bf16.msra.mxu0 0
    %1164 = vmatprep.subr.bf16.mxu0 0
    %1165 = vmatpush1.bf16.msra.mxu0 0
    %1166 = vmatprep.mubr.bf16.mxu0 0
    %1167 = vmatmul.mubr.bf16.gmra.mrb[0].mxu0 %v1091
    %v1168 = vpop.f32.mrb[0].mxu0
    %v1169 = vadd.f32 0.0, %v1168
    %v1170 = vpop.f32.mrb[0].mxu0
    %v1171 = vpop.f32.mrb[0].mxu0
    %v1172 = vpop.f32.mrb[0].mxu0
    %1173 = vdwg.mxu0
    %v1174 = vadd.f32 %v923, %v1128
    %v1175 = vadd.f32 %v925, %v1130
    %v1176 = vadd.f32 %v964, %v1169
    %vm1177 = vcmask 261126
    %v1178 = vsel %vm1177, %v478, -inf
    %v1179 = vrot.slane %v1178, 4
    %v1180 = vmax.f32 %v1178, %v1179
    %v1181 = vrot.slane %v1180, 2
    %v1182 = vmax.f32 %v1180, %v1181
    %v1183 = vrot.slane %v1182, 1
    %v1184 = vmax.f32 %v1182, %v1183
    %v1185 = vsel %vm1177, %v479, -inf
    %v1186 = vrot.slane %v1185, 4
    %v1187 = vmax.f32 %v1185, %v1186
    %v1188 = vrot.slane %v1187, 2
    %v1189 = vmax.f32 %v1187, %v1188
    %v1190 = vrot.slane %v1189, 1
    %v1191 = vmax.f32 %v1189, %v1190
    %v1192 = vsel %vm1177, %v480, -inf
    %v1193 = vrot.slane %v1192, 4
    %v1194 = vmax.f32 %v1192, %v1193
    %v1195 = vrot.slane %v1194, 2
    %v1196 = vmax.f32 %v1194, %v1195
    %v1197 = vrot.slane %v1196, 1
    %v1198 = vmax.f32 %v1196, %v1197
    %v1199 = vsel %vm1177, %v481, -inf
    %v1200 = vrot.slane %v1199, 4
    %v1201 = vmax.f32 %v1199, %v1200
    %v1202 = vrot.slane %v1201, 2
    %v1203 = vmax.f32 %v1201, %v1202
    %v1204 = vrot.slane %v1203, 1
    %v1205 = vmax.f32 %v1203, %v1204
    %v1206 = vsel %vm1177, %v482, -inf
    %v1207 = vrot.slane %v1206, 4
    %v1208 = vmax.f32 %v1206, %v1207
    %v1209 = vrot.slane %v1208, 2
    %v1210 = vmax.f32 %v1208, %v1209
    %v1211 = vrot.slane %v1210, 1
    %v1212 = vmax.f32 %v1210, %v1211
    %v1213 = vsel %vm1177, %v483, -inf
    %v1214 = vrot.slane %v1213, 4
    %v1215 = vmax.f32 %v1213, %v1214
    %v1216 = vrot.slane %v1215, 2
    %v1217 = vmax.f32 %v1215, %v1216
    %v1218 = vrot.slane %v1217, 1
    %v1219 = vmax.f32 %v1217, %v1218
    %v1220 = vsel %vm1177, %v484, -inf
    %v1221 = vrot.slane %v1220, 4
    %v1222 = vmax.f32 %v1220, %v1221
    %v1223 = vrot.slane %v1222, 2
    %v1224 = vmax.f32 %v1222, %v1223
    %v1225 = vrot.slane %v1224, 1
    %v1226 = vmax.f32 %v1224, %v1225
    %v1227 = vsel %vm1177, %v485, -inf
    %v1228 = vrot.slane %v1227, 4
    %v1229 = vmax.f32 %v1227, %v1228
    %v1230 = vrot.slane %v1229, 2
    %v1231 = vmax.f32 %v1229, %v1230
    %v1232 = vrot.slane %v1231, 1
    %v1233 = vmax.f32 %v1231, %v1232
    %v1234 = vpack.c.bf16 %v1184, %v1184
    %v1235 = vpack.c.bf16 %v1191, %v1191
    %v1236 = vpack.c.bf16 %v1198, %v1198
    %v1237 = vpack.c.bf16 %v1205, %v1205
    %v1238 = vpack.c.bf16 %v1212, %v1212
    %v1239 = vpack.c.bf16 %v1219, %v1219
    %v1240 = vpack.c.bf16 %v1226, %v1226
    %v1241 = vpack.c.bf16 %v1233, %v1233
    %v1250 = vunpack.c.l.b16 %v1234
    %v1251 = vunpack.c.l.b16 %v1235
    %v1252 = vunpack.c.l.b16 %v1236
    %v1253 = vunpack.c.l.b16 %v1237
    %v1254 = vunpack.c.l.b16 %v1238
    %v1255 = vunpack.c.l.b16 %v1239
    %v1256 = vunpack.c.l.b16 %v1240
    %v1257 = vunpack.c.l.b16 %v1241
    %v1258 = vsel %vm697, %v1251, %v1250
    %v1259 = vsel %vm699, %v1252, %v1258
    %v1260 = vsel %vm701, %v1253, %v1259
    %v1261 = vsel %vm703, %v1254, %v1260
    %v1262 = vsel %vm705, %v1255, %v1261
    %v1263 = vsel %vm707, %v1256, %v1262
    %v1264 = vsel %vm709, %v1257, %v1263
    %v1265 = vpack.c.b16 %v1264, %v1264
    %v1274 = vunpack.c.l.b16 %v510
    %v1275 = vunpack.c.h.b16 %v510
    %v1276 = vunpack.c.l.b16 %v511
    %v1277 = vunpack.c.l.b16 %v512
    %v1278 = vunpack.c.h.b16 %v512
    %v1279 = vunpack.c.l.b16 %v513
    %v1280 = vunpack.c.l.b16 %v514
    %v1281 = vunpack.c.h.b16 %v514
    %v1282 = vunpack.c.l.b16 %v515
    %v1283 = vunpack.c.l.b16 %v516
    %v1284 = vunpack.c.h.b16 %v516
    %v1285 = vunpack.c.l.b16 %v517
    %v1286 = vpack.c.b16 %v1277, %v1274
    %v1287 = vpack.c.b16 %v1278, %v1275
    %v1288 = vpack.c.b16 %v1279, %v1276
    %v1289 = vpack.c.b16 %v1283, %v1280
    %v1290 = vpack.c.b16 %v1284, %v1281
    %v1291 = vpack.c.b16 %v1285, %v1282
    %v1299 = vsel %vm744, %v1265, 0
    %1301 = vmatprep.subr.bf16.mxu0 %v1287
    %1302 = vmatpush1.bf16.msra.mxu0 %v1286
    %1303 = vmatprep.subr.bf16.mxu0 %v1290
    %1304 = vmatpush1.bf16.msra.mxu0 %v1289
    %1305 = vmatprep.subr.bf16.mxu0 0
    %1306 = vmatpush1.bf16.msra.mxu0 0
    %1307 = vmatprep.subr.bf16.mxu0 0
    %1308 = vmatpush1.bf16.msra.mxu0 0
    %1309 = vmatprep.subr.bf16.mxu0 0
    %1310 = vmatpush1.bf16.msra.mxu0 0
    %1311 = vmatprep.subr.bf16.mxu0 0
    %1312 = vmatpush1.bf16.msra.mxu0 0
    %1313 = vmatprep.subr.bf16.mxu0 0
    %1314 = vmatpush1.bf16.msra.mxu0 0
    %1315 = vmatprep.subr.bf16.mxu0 0
    %1316 = vmatpush1.bf16.msra.mxu0 0
    %1317 = vmatprep.subr.bf16.mxu0 0
    %1318 = vmatpush1.bf16.msra.mxu0 0
    %1319 = vmatprep.subr.bf16.mxu0 0
    %1320 = vmatpush1.bf16.msra.mxu0 0
    %1321 = vmatprep.subr.bf16.mxu0 0
    %1322 = vmatpush1.bf16.msra.mxu0 0
    %1323 = vmatprep.subr.bf16.mxu0 0
    %1324 = vmatpush1.bf16.msra.mxu0 0
    %1325 = vmatprep.subr.bf16.mxu0 0
    %1326 = vmatpush1.bf16.msra.mxu0 0
    %1327 = vmatprep.subr.bf16.mxu0 0
    %1328 = vmatpush1.bf16.msra.mxu0 0
    %1329 = vmatprep.subr.bf16.mxu0 0
    %1330 = vmatpush1.bf16.msra.mxu0 0
    %1331 = vmatprep.subr.bf16.mxu0 0
    %1332 = vmatpush1.bf16.msra.mxu0 0
    %1333 = vmatprep.mubr.bf16.mxu0 0
    %1334 = vmatmul.mubr.bf16.gmra.mrb[0].mxu0 %v1299
    %v1335 = vpop.f32.mrb[0].mxu0
    %v1336 = vadd.f32 0.0, %v1335
    %v1337 = vpop.f32.mrb[0].mxu0
    %v1338 = vadd.f32 0.0, %v1337
    %v1339 = vpop.f32.mrb[0].mxu0
    %v1340 = vpop.f32.mrb[0].mxu0
    %1341 = vdwg.mxu0
    %1342 = vmatprep.subr.bf16.mxu0 0
    %1343 = vmatpush1.bf16.msra.mxu0 %v1288
    %1344 = vmatprep.subr.bf16.mxu0 0
    %1345 = vmatpush1.bf16.msra.mxu0 %v1291
    %1346 = vmatprep.subr.bf16.mxu0 0
    %1347 = vmatpush1.bf16.msra.mxu0 0
    %1348 = vmatprep.subr.bf16.mxu0 0
    %1349 = vmatpush1.bf16.msra.mxu0 0
    %1350 = vmatprep.subr.bf16.mxu0 0
    %1351 = vmatpush1.bf16.msra.mxu0 0
    %1352 = vmatprep.subr.bf16.mxu0 0
    %1353 = vmatpush1.bf16.msra.mxu0 0
    %1354 = vmatprep.subr.bf16.mxu0 0
    %1355 = vmatpush1.bf16.msra.mxu0 0
    %1356 = vmatprep.subr.bf16.mxu0 0
    %1357 = vmatpush1.bf16.msra.mxu0 0
    %1358 = vmatprep.subr.bf16.mxu0 0
    %1359 = vmatpush1.bf16.msra.mxu0 0
    %1360 = vmatprep.subr.bf16.mxu0 0
    %1361 = vmatpush1.bf16.msra.mxu0 0
    %1362 = vmatprep.subr.bf16.mxu0 0
    %1363 = vmatpush1.bf16.msra.mxu0 0
    %1364 = vmatprep.subr.bf16.mxu0 0
    %1365 = vmatpush1.bf16.msra.mxu0 0
    %1366 = vmatprep.subr.bf16.mxu0 0
    %1367 = vmatpush1.bf16.msra.mxu0 0
    %1368 = vmatprep.subr.bf16.mxu0 0
    %1369 = vmatpush1.bf16.msra.mxu0 0
    %1370 = vmatprep.subr.bf16.mxu0 0
    %1371 = vmatpush1.bf16.msra.mxu0 0
    %1372 = vmatprep.subr.bf16.mxu0 0
    %1373 = vmatpush1.bf16.msra.mxu0 0
    %1374 = vmatprep.mubr.bf16.mxu0 0
    %1375 = vmatmul.mubr.bf16.gmra.mrb[0].mxu0 %v1299
    %v1376 = vpop.f32.mrb[0].mxu0
    %v1377 = vadd.f32 0.0, %v1376
    %v1378 = vpop.f32.mrb[0].mxu0
    %v1379 = vpop.f32.mrb[0].mxu0
    %v1380 = vpop.f32.mrb[0].mxu0
    %1381 = vdwg.mxu0
    %v1382 = vadd.f32 %v1174, %v1336
    %v1383 = vadd.f32 %v1175, %v1338
    %v1384 = vadd.f32 %v1176, %v1377
    %v1385 = vld [vmem:[%s4] sm:$0x7]
    %v1387 = vlaneseq
    %v1388 = vshrl.u32 %v1387, 7
    %v1389 = vsub.s32 0, %v1388
    %v1390 = vrot.slane %v1385, %v1389
    %v1391 = vlaneseq
    %v1392 = vshrl.u32 %v1391, 7
    %v1393 = vsub.s32 1, %v1392
    %v1394 = vrot.slane %v1385, %v1393
    %v1395 = vlaneseq
    %v1396 = vshrl.u32 %v1395, 7
    %v1397 = vsub.s32 2, %v1396
    %v1398 = vrot.slane %v1385, %v1397
    %v1402 = vadd.f32 %v1382, %v1390
    %v1403 = vadd.f32 %v1383, %v1394
    %v1404 = vadd.f32 %v1384, %v1398
    %v1406 = vlaneseq
    %v1407 = vshrl.u32 %v1406, 7
    %v1408 = vsub.s32 0, %v1407
    %v1409 = vrot.slane %v550, %v1408
    %v1410 = vlaneseq
    %v1411 = vshrl.u32 %v1410, 7
    %v1412 = vsub.s32 1, %v1411
    %v1413 = vrot.slane %v550, %v1412
    %v1414 = vlaneseq
    %v1415 = vshrl.u32 %v1414, 7
    %v1416 = vsub.s32 2, %v1415
    %v1417 = vrot.slane %v550, %v1416
    %v1453 = vunpack.c.l.b16 %v518
    %v1454 = vunpack.c.h.b16 %v518
    %v1455 = vunpack.c.l.b16 %v519
    %v1456 = vunpack.c.l.b16 %v520
    %v1457 = vunpack.c.h.b16 %v520
    %v1458 = vunpack.c.l.b16 %v521
    %v1459 = vunpack.c.l.b16 %v522
    %v1460 = vunpack.c.h.b16 %v522
    %v1461 = vunpack.c.l.b16 %v523
    %v1462 = vunpack.c.l.b16 %v524
    %v1463 = vunpack.c.h.b16 %v524
    %v1464 = vunpack.c.l.b16 %v525
    %v1465 = vunpack.c.l.b16 %v526
    %v1466 = vunpack.c.h.b16 %v526
    %v1467 = vunpack.c.l.b16 %v527
    %v1468 = vunpack.c.l.b16 %v528
    %v1469 = vunpack.c.h.b16 %v528
    %v1470 = vunpack.c.l.b16 %v529
    %v1471 = vunpack.c.l.b16 %v530
    %v1472 = vunpack.c.h.b16 %v530
    %v1473 = vunpack.c.l.b16 %v531
    %v1474 = vunpack.c.l.b16 %v532
    %v1475 = vunpack.c.h.b16 %v532
    %v1476 = vunpack.c.l.b16 %v533
    %v1477 = vunpack.c.l.b16 %v534
    %v1478 = vunpack.c.h.b16 %v534
    %v1479 = vunpack.c.l.b16 %v535
    %v1480 = vunpack.c.l.b16 %v536
    %v1481 = vunpack.c.h.b16 %v536
    %v1482 = vunpack.c.l.b16 %v537
    %v1483 = vunpack.c.l.b16 %v538
    %v1484 = vunpack.c.h.b16 %v538
    %v1485 = vunpack.c.l.b16 %v539
    %v1486 = vunpack.c.l.b16 %v540
    %v1487 = vunpack.c.h.b16 %v540
    %v1488 = vunpack.c.l.b16 %v541
    %v1489 = vunpack.c.l.b16 %v542
    %v1490 = vunpack.c.h.b16 %v542
    %v1491 = vunpack.c.l.b16 %v543
    %v1492 = vunpack.c.l.b16 %v544
    %v1493 = vunpack.c.h.b16 %v544
    %v1494 = vunpack.c.l.b16 %v545
    %v1495 = vunpack.c.l.b16 %v546
    %v1496 = vunpack.c.h.b16 %v546
    %v1497 = vunpack.c.l.b16 %v547
    %v1498 = vunpack.c.l.b16 %v548
    %v1499 = vunpack.c.h.b16 %v548
    %v1500 = vunpack.c.l.b16 %v549
    %v1501 = vpack.c.b16 %v1456, %v1453
    %v1502 = vpack.c.b16 %v1457, %v1454
    %v1503 = vpack.c.b16 %v1458, %v1455
    %v1504 = vpack.c.b16 %v1462, %v1459
    %v1505 = vpack.c.b16 %v1463, %v1460
    %v1506 = vpack.c.b16 %v1464, %v1461
    %v1507 = vpack.c.b16 %v1468, %v1465
    %v1508 = vpack.c.b16 %v1469, %v1466
    %v1509 = vpack.c.b16 %v1470, %v1467
    %v1510 = vpack.c.b16 %v1474, %v1471
    %v1511 = vpack.c.b16 %v1475, %v1472
    %v1512 = vpack.c.b16 %v1476, %v1473
    %v1513 = vpack.c.b16 %v1480, %v1477
    %v1514 = vpack.c.b16 %v1481, %v1478
    %v1515 = vpack.c.b16 %v1482, %v1479
    %v1516 = vpack.c.b16 %v1486, %v1483
    %v1517 = vpack.c.b16 %v1487, %v1484
    %v1518 = vpack.c.b16 %v1488, %v1485
    %v1519 = vpack.c.b16 %v1492, %v1489
    %v1520 = vpack.c.b16 %v1493, %v1490
    %v1521 = vpack.c.b16 %v1494, %v1491
    %v1522 = vpack.c.b16 %v1498, %v1495
    %v1523 = vpack.c.b16 %v1499, %v1496
    %v1524 = vpack.c.b16 %v1500, %v1497
    %1549 = vmatprep.subr.bf16.mxu0 %v1502
    %1550 = vmatpush1.bf16.msra.mxu0 %v1501
    %1551 = vmatprep.subr.bf16.mxu0 %v1505
    %1552 = vmatpush1.bf16.msra.mxu0 %v1504
    %1553 = vmatprep.subr.bf16.mxu0 %v1508
    %1554 = vmatpush1.bf16.msra.mxu0 %v1507
    %1555 = vmatprep.subr.bf16.mxu0 %v1511
    %1556 = vmatpush1.bf16.msra.mxu0 %v1510
    %1557 = vmatprep.subr.bf16.mxu0 %v1514
    %1558 = vmatpush1.bf16.msra.mxu0 %v1513
    %1559 = vmatprep.subr.bf16.mxu0 %v1517
    %1560 = vmatpush1.bf16.msra.mxu0 %v1516
    %1561 = vmatprep.subr.bf16.mxu0 %v1520
    %1562 = vmatpush1.bf16.msra.mxu0 %v1519
    %1563 = vmatprep.subr.bf16.mxu0 %v1523
    %1564 = vmatpush1.bf16.msra.mxu0 %v1522
    %1565 = vmatprep.subr.bf16.mxu0 0
    %1566 = vmatpush1.bf16.msra.mxu0 0
    %1567 = vmatprep.subr.bf16.mxu0 0
    %1568 = vmatpush1.bf16.msra.mxu0 0
    %1569 = vmatprep.subr.bf16.mxu0 0
    %1570 = vmatpush1.bf16.msra.mxu0 0
    %1571 = vmatprep.subr.bf16.mxu0 0
    %1572 = vmatpush1.bf16.msra.mxu0 0
    %1573 = vmatprep.subr.bf16.mxu0 0
    %1574 = vmatpush1.bf16.msra.mxu0 0
    %1575 = vmatprep.subr.bf16.mxu0 0
    %1576 = vmatpush1.bf16.msra.mxu0 0
    %1577 = vmatprep.subr.bf16.mxu0 0
    %1578 = vmatpush1.bf16.msra.mxu0 0
    %1579 = vmatprep.subr.bf16.mxu0 0
    %1580 = vmatpush1.bf16.msra.mxu0 0
    %1581 = vmatprep.mubr.bf16.mxu0 0
    %1582 = vmatmul.mubr.bf16.gmra.mrb[0].mxu0 0
    %v1583 = vpop.f32.mrb[0].mxu0
    %v1584 = vadd.f32 %v1409, %v1583
    %v1585 = vpop.f32.mrb[0].mxu0
    %v1586 = vadd.f32 %v1413, %v1585
    %v1587 = vpop.f32.mrb[0].mxu0
    %v1588 = vpop.f32.mrb[0].mxu0
    %1589 = vdwg.mxu0
    %1590 = vmatprep.subr.bf16.mxu0 0
    %1591 = vmatpush1.bf16.msra.mxu0 %v1503
    %1592 = vmatprep.subr.bf16.mxu0 0
    %1593 = vmatpush1.bf16.msra.mxu0 %v1506
    %1594 = vmatprep.subr.bf16.mxu0 0
    %1595 = vmatpush1.bf16.msra.mxu0 %v1509
    %1596 = vmatprep.subr.bf16.mxu0 0
    %1597 = vmatpush1.bf16.msra.mxu0 %v1512
    %1598 = vmatprep.subr.bf16.mxu0 0
    %1599 = vmatpush1.bf16.msra.mxu0 %v1515
    %1600 = vmatprep.subr.bf16.mxu0 0
    %1601 = vmatpush1.bf16.msra.mxu0 %v1518
    %1602 = vmatprep.subr.bf16.mxu0 0
    %1603 = vmatpush1.bf16.msra.mxu0 %v1521
    %1604 = vmatprep.subr.bf16.mxu0 0
    %1605 = vmatpush1.bf16.msra.mxu0 %v1524
    %1606 = vmatprep.subr.bf16.mxu0 0
    %1607 = vmatpush1.bf16.msra.mxu0 0
    %1608 = vmatprep.subr.bf16.mxu0 0
    %1609 = vmatpush1.bf16.msra.mxu0 0
    %1610 = vmatprep.subr.bf16.mxu0 0
    %1611 = vmatpush1.bf16.msra.mxu0 0
    %1612 = vmatprep.subr.bf16.mxu0 0
    %1613 = vmatpush1.bf16.msra.mxu0 0
    %1614 = vmatprep.subr.bf16.mxu0 0
    %1615 = vmatpush1.bf16.msra.mxu0 0
    %1616 = vmatprep.subr.bf16.mxu0 0
    %1617 = vmatpush1.bf16.msra.mxu0 0
    %1618 = vmatprep.subr.bf16.mxu0 0
    %1619 = vmatpush1.bf16.msra.mxu0 0
    %1620 = vmatprep.subr.bf16.mxu0 0
    %1621 = vmatpush1.bf16.msra.mxu0 0
    %1622 = vmatprep.mubr.bf16.mxu0 0
    %1623 = vmatmul.mubr.bf16.gmra.mrb[0].mxu0 0
    %v1624 = vpop.f32.mrb[0].mxu0
    %v1625 = vadd.f32 %v1417, %v1624
    %v1626 = vpop.f32.mrb[0].mxu0
    %v1627 = vpop.f32.mrb[0].mxu0
    %v1628 = vpop.f32.mrb[0].mxu0
    %1629 = vdwg.mxu0
    %v1630 = vadd.f32 %v1402, %v1584
    %v1631 = vxor.u32 %v1630, 2147483648
    %v1632 = vmul.f32 %v1631, 1.442695
    %v1633 = vpow.pop %v1632
    %v1634 = vadd.f32 %v1633, 1.0
    %v1635 = vrcp.pop %v1634
    %v1636 = vmul.f32 1.0, %v1635
    %v1637 = vadd.f32 %v1403, %v1586
    %v1638 = vxor.u32 %v1637, 2147483648
    %v1639 = vmul.f32 %v1638, 1.442695
    %v1640 = vpow.pop %v1639
    %v1641 = vadd.f32 %v1640, 1.0
    %v1642 = vrcp.pop %v1641
    %v1643 = vmul.f32 1.0, %v1642
    %v1644 = vmul.f32 %v1636, %v1625
    %v1645 = vadd.f32 %v1404, %v1644
    %v1646 = vtanh.pop %v1645
    %v1647 = vsub.f32 1.0, %v1643
    %v1648 = vmul.f32 %v1647, %v1646
    %v1649 = vmul.f32 %v1643, 0.0
    %v1650 = vadd.f32 %v1648, %v1649
    %v1651 = vpack.c.bf16 %v1650, %v1650
    %1652 = vmatprep.subr.bf16.mxu0 %v1502
    %1653 = vmatpush1.bf16.msra.mxu0 %v1501
    %1654 = vmatprep.subr.bf16.mxu0 %v1505
    %1655 = vmatpush1.bf16.msra.mxu0 %v1504
    %1656 = vmatprep.subr.bf16.mxu0 %v1508
    %1657 = vmatpush1.bf16.msra.mxu0 %v1507
    %1658 = vmatprep.subr.bf16.mxu0 %v1511
    %1659 = vmatpush1.bf16.msra.mxu0 %v1510
    %1660 = vmatprep.subr.bf16.mxu0 %v1514
    %1661 = vmatpush1.bf16.msra.mxu0 %v1513
    %1662 = vmatprep.subr.bf16.mxu0 %v1517
    %1663 = vmatpush1.bf16.msra.mxu0 %v1516
    %1664 = vmatprep.subr.bf16.mxu0 %v1520
    %1665 = vmatpush1.bf16.msra.mxu0 %v1519
    %1666 = vmatprep.subr.bf16.mxu0 %v1523
    %1667 = vmatpush1.bf16.msra.mxu0 %v1522
    %1668 = vmatprep.subr.bf16.mxu0 0
    %1669 = vmatpush1.bf16.msra.mxu0 0
    %1670 = vmatprep.subr.bf16.mxu0 0
    %1671 = vmatpush1.bf16.msra.mxu0 0
    %1672 = vmatprep.subr.bf16.mxu0 0
    %1673 = vmatpush1.bf16.msra.mxu0 0
    %1674 = vmatprep.subr.bf16.mxu0 0
    %1675 = vmatpush1.bf16.msra.mxu0 0
    %1676 = vmatprep.subr.bf16.mxu0 0
    %1677 = vmatpush1.bf16.msra.mxu0 0
    %1678 = vmatprep.subr.bf16.mxu0 0
    %1679 = vmatpush1.bf16.msra.mxu0 0
    %1680 = vmatprep.subr.bf16.mxu0 0
    %1681 = vmatpush1.bf16.msra.mxu0 0
    %1682 = vmatprep.subr.bf16.mxu0 0
    %1683 = vmatpush1.bf16.msra.mxu0 0
    %1684 = vmatprep.mubr.bf16.mxu0 0
    %1685 = vmatmul.mubr.bf16.gmra.mrb[0].mxu0 %v1651
    %v1686 = vpop.f32.mrb[0].mxu0
    %v1687 = vadd.f32 %v1409, %v1686
    %v1688 = vpop.f32.mrb[0].mxu0
    %v1689 = vadd.f32 %v1413, %v1688
    %v1690 = vpop.f32.mrb[0].mxu0
    %v1691 = vpop.f32.mrb[0].mxu0
    %1692 = vdwg.mxu0
    %1693 = vmatprep.subr.bf16.mxu0 0
    %1694 = vmatpush1.bf16.msra.mxu0 %v1503
    %1695 = vmatprep.subr.bf16.mxu0 0
    %1696 = vmatpush1.bf16.msra.mxu0 %v1506
    %1697 = vmatprep.subr.bf16.mxu0 0
    %1698 = vmatpush1.bf16.msra.mxu0 %v1509
    %1699 = vmatprep.subr.bf16.mxu0 0
    %1700 = vmatpush1.bf16.msra.mxu0 %v1512
    %1701 = vmatprep.subr.bf16.mxu0 0
    %1702 = vmatpush1.bf16.msra.mxu0 %v1515
    %1703 = vmatprep.subr.bf16.mxu0 0
    %1704 = vmatpush1.bf16.msra.mxu0 %v1518
    %1705 = vmatprep.subr.bf16.mxu0 0
    %1706 = vmatpush1.bf16.msra.mxu0 %v1521
    %1707 = vmatprep.subr.bf16.mxu0 0
    %1708 = vmatpush1.bf16.msra.mxu0 %v1524
    %1709 = vmatprep.subr.bf16.mxu0 0
    %1710 = vmatpush1.bf16.msra.mxu0 0
    %1711 = vmatprep.subr.bf16.mxu0 0
    %1712 = vmatpush1.bf16.msra.mxu0 0
    %1713 = vmatprep.subr.bf16.mxu0 0
    %1714 = vmatpush1.bf16.msra.mxu0 0
    %1715 = vmatprep.subr.bf16.mxu0 0
    %1716 = vmatpush1.bf16.msra.mxu0 0
    %1717 = vmatprep.subr.bf16.mxu0 0
    %1718 = vmatpush1.bf16.msra.mxu0 0
    %1719 = vmatprep.subr.bf16.mxu0 0
    %1720 = vmatpush1.bf16.msra.mxu0 0
    %1721 = vmatprep.subr.bf16.mxu0 0
    %1722 = vmatpush1.bf16.msra.mxu0 0
    %1723 = vmatprep.subr.bf16.mxu0 0
    %1724 = vmatpush1.bf16.msra.mxu0 0
    %1725 = vmatprep.mubr.bf16.mxu0 0
    %1726 = vmatmul.mubr.bf16.gmra.mrb[0].mxu0 %v1651
    %v1727 = vpop.f32.mrb[0].mxu0
    %v1728 = vadd.f32 %v1417, %v1727
    %v1729 = vpop.f32.mrb[0].mxu0
    %v1730 = vpop.f32.mrb[0].mxu0
    %v1731 = vpop.f32.mrb[0].mxu0
    %1732 = vdwg.mxu0
    %v1734 = vrot.slane %v1687, 6
    %v1736 = vadd.f32 %v1402, %v1734
    %v1737 = vxor.u32 %v1736, 2147483648
    %v1738 = vmul.f32 %v1737, 1.442695
    %v1739 = vpow.pop %v1738
    %v1740 = vadd.f32 %v1739, 1.0
    %v1741 = vrcp.pop %v1740
    %v1742 = vmul.f32 1.0, %v1741
    %v1744 = vrot.slane %v1689, 6
    %v1746 = vadd.f32 %v1403, %v1744
    %v1747 = vxor.u32 %v1746, 2147483648
    %v1748 = vmul.f32 %v1747, 1.442695
    %v1749 = vpow.pop %v1748
    %v1750 = vadd.f32 %v1749, 1.0
    %v1751 = vrcp.pop %v1750
    %v1752 = vmul.f32 1.0, %v1751
    %v1754 = vrot.slane %v1728, 6
    %v1756 = vmul.f32 %v1742, %v1754
    %v1757 = vadd.f32 %v1404, %v1756
    %v1758 = vtanh.pop %v1757
    %v1759 = vsub.f32 1.0, %v1752
    %v1760 = vmul.f32 %v1759, %v1758
    %v1762 = vrot.slane %v1650, 6
    %v1764 = vmul.f32 %v1752, %v1762
    %v1765 = vadd.f32 %v1760, %v1764
    %v1766 = vpack.c.bf16 %v1765, %v1765
    %v1768 = vrot.slane %v1766, 1
    %1770 = vmatprep.subr.bf16.mxu0 %v1502
    %1771 = vmatpush1.bf16.msra.mxu0 %v1501
    %1772 = vmatprep.subr.bf16.mxu0 %v1505
    %1773 = vmatpush1.bf16.msra.mxu0 %v1504
    %1774 = vmatprep.subr.bf16.mxu0 %v1508
    %1775 = vmatpush1.bf16.msra.mxu0 %v1507
    %1776 = vmatprep.subr.bf16.mxu0 %v1511
    %1777 = vmatpush1.bf16.msra.mxu0 %v1510
    %1778 = vmatprep.subr.bf16.mxu0 %v1514
    %1779 = vmatpush1.bf16.msra.mxu0 %v1513
    %1780 = vmatprep.subr.bf16.mxu0 %v1517
    %1781 = vmatpush1.bf16.msra.mxu0 %v1516
    %1782 = vmatprep.subr.bf16.mxu0 %v1520
    %1783 = vmatpush1.bf16.msra.mxu0 %v1519
    %1784 = vmatprep.subr.bf16.mxu0 %v1523
    %1785 = vmatpush1.bf16.msra.mxu0 %v1522
    %1786 = vmatprep.subr.bf16.mxu0 0
    %1787 = vmatpush1.bf16.msra.mxu0 0
    %1788 = vmatprep.subr.bf16.mxu0 0
    %1789 = vmatpush1.bf16.msra.mxu0 0
    %1790 = vmatprep.subr.bf16.mxu0 0
    %1791 = vmatpush1.bf16.msra.mxu0 0
    %1792 = vmatprep.subr.bf16.mxu0 0
    %1793 = vmatpush1.bf16.msra.mxu0 0
    %1794 = vmatprep.subr.bf16.mxu0 0
    %1795 = vmatpush1.bf16.msra.mxu0 0
    %1796 = vmatprep.subr.bf16.mxu0 0
    %1797 = vmatpush1.bf16.msra.mxu0 0
    %1798 = vmatprep.subr.bf16.mxu0 0
    %1799 = vmatpush1.bf16.msra.mxu0 0
    %1800 = vmatprep.subr.bf16.mxu0 0
    %1801 = vmatpush1.bf16.msra.mxu0 0
    %1802 = vmatprep.mubr.bf16.mxu0 0
    %1803 = vmatmul.mubr.bf16.gmra.mrb[0].mxu0 %v1768
    %v1804 = vpop.f32.mrb[0].mxu0
    %v1805 = vadd.f32 %v1409, %v1804
    %v1806 = vpop.f32.mrb[0].mxu0
    %v1807 = vadd.f32 %v1413, %v1806
    %v1808 = vpop.f32.mrb[0].mxu0
    %v1809 = vpop.f32.mrb[0].mxu0
    %1810 = vdwg.mxu0
    %1811 = vmatprep.subr.bf16.mxu0 0
    %1812 = vmatpush1.bf16.msra.mxu0 %v1503
    %1813 = vmatprep.subr.bf16.mxu0 0
    %1814 = vmatpush1.bf16.msra.mxu0 %v1506
    %1815 = vmatprep.subr.bf16.mxu0 0
    %1816 = vmatpush1.bf16.msra.mxu0 %v1509
    %1817 = vmatprep.subr.bf16.mxu0 0
    %1818 = vmatpush1.bf16.msra.mxu0 %v1512
    %1819 = vmatprep.subr.bf16.mxu0 0
    %1820 = vmatpush1.bf16.msra.mxu0 %v1515
    %1821 = vmatprep.subr.bf16.mxu0 0
    %1822 = vmatpush1.bf16.msra.mxu0 %v1518
    %1823 = vmatprep.subr.bf16.mxu0 0
    %1824 = vmatpush1.bf16.msra.mxu0 %v1521
    %1825 = vmatprep.subr.bf16.mxu0 0
    %1826 = vmatpush1.bf16.msra.mxu0 %v1524
    %1827 = vmatprep.subr.bf16.mxu0 0
    %1828 = vmatpush1.bf16.msra.mxu0 0
    %1829 = vmatprep.subr.bf16.mxu0 0
    %1830 = vmatpush1.bf16.msra.mxu0 0
    %1831 = vmatprep.subr.bf16.mxu0 0
    %1832 = vmatpush1.bf16.msra.mxu0 0
    %1833 = vmatprep.subr.bf16.mxu0 0
    %1834 = vmatpush1.bf16.msra.mxu0 0
    %1835 = vmatprep.subr.bf16.mxu0 0
    %1836 = vmatpush1.bf16.msra.mxu0 0
    %1837 = vmatprep.subr.bf16.mxu0 0
    %1838 = vmatpush1.bf16.msra.mxu0 0
    %1839 = vmatprep.subr.bf16.mxu0 0
    %1840 = vmatpush1.bf16.msra.mxu0 0
    %1841 = vmatprep.subr.bf16.mxu0 0
    %1842 = vmatpush1.bf16.msra.mxu0 0
    %1843 = vmatprep.mubr.bf16.mxu0 0
    %1844 = vmatmul.mubr.bf16.gmra.mrb[0].mxu0 %v1768
    %v1845 = vpop.f32.mrb[0].mxu0
    %v1846 = vadd.f32 %v1417, %v1845
    %v1847 = vpop.f32.mrb[0].mxu0
    %v1848 = vpop.f32.mrb[0].mxu0
    %v1849 = vpop.f32.mrb[0].mxu0
    %1850 = vdwg.mxu0
    %v1852 = vrot.slane %v1805, 4
    %v1854 = vadd.f32 %v1402, %v1852
    %v1855 = vxor.u32 %v1854, 2147483648
    %v1856 = vmul.f32 %v1855, 1.442695
    %v1857 = vpow.pop %v1856
    %v1858 = vadd.f32 %v1857, 1.0
    %v1859 = vrcp.pop %v1858
    %v1860 = vmul.f32 1.0, %v1859
    %v1862 = vrot.slane %v1807, 4
    %v1864 = vadd.f32 %v1403, %v1862
    %v1865 = vxor.u32 %v1864, 2147483648
    %v1866 = vmul.f32 %v1865, 1.442695
    %v1867 = vpow.pop %v1866
    %v1868 = vadd.f32 %v1867, 1.0
    %v1869 = vrcp.pop %v1868
    %v1870 = vmul.f32 1.0, %v1869
    %v1872 = vrot.slane %v1846, 4
    %v1874 = vmul.f32 %v1860, %v1872
    %v1875 = vadd.f32 %v1404, %v1874
    %v1876 = vtanh.pop %v1875
    %v1877 = vsub.f32 1.0, %v1870
    %v1878 = vmul.f32 %v1877, %v1876
    %v1880 = vrot.slane %v1765, 6
    %v1882 = vmul.f32 %v1870, %v1880
    %v1883 = vadd.f32 %v1878, %v1882
    %v1884 = vpack.c.bf16 %v1883, %v1883
    %v1886 = vrot.slane %v1884, 2
    %1888 = vmatprep.subr.bf16.mxu0 %v1502
    %1889 = vmatpush1.bf16.msra.mxu0 %v1501
    %1890 = vmatprep.subr.bf16.mxu0 %v1505
    %1891 = vmatpush1.bf16.msra.mxu0 %v1504
    %1892 = vmatprep.subr.bf16.mxu0 %v1508
    %1893 = vmatpush1.bf16.msra.mxu0 %v1507
    %1894 = vmatprep.subr.bf16.mxu0 %v1511
    %1895 = vmatpush1.bf16.msra.mxu0 %v1510
    %1896 = vmatprep.subr.bf16.mxu0 %v1514
    %1897 = vmatpush1.bf16.msra.mxu0 %v1513
    %1898 = vmatprep.subr.bf16.mxu0 %v1517
    %1899 = vmatpush1.bf16.msra.mxu0 %v1516
    %1900 = vmatprep.subr.bf16.mxu0 %v1520
    %1901 = vmatpush1.bf16.msra.mxu0 %v1519
    %1902 = vmatprep.subr.bf16.mxu0 %v1523
    %1903 = vmatpush1.bf16.msra.mxu0 %v1522
    %1904 = vmatprep.subr.bf16.mxu0 0
    %1905 = vmatpush1.bf16.msra.mxu0 0
    %1906 = vmatprep.subr.bf16.mxu0 0
    %1907 = vmatpush1.bf16.msra.mxu0 0
    %1908 = vmatprep.subr.bf16.mxu0 0
    %1909 = vmatpush1.bf16.msra.mxu0 0
    %1910 = vmatprep.subr.bf16.mxu0 0
    %1911 = vmatpush1.bf16.msra.mxu0 0
    %1912 = vmatprep.subr.bf16.mxu0 0
    %1913 = vmatpush1.bf16.msra.mxu0 0
    %1914 = vmatprep.subr.bf16.mxu0 0
    %1915 = vmatpush1.bf16.msra.mxu0 0
    %1916 = vmatprep.subr.bf16.mxu0 0
    %1917 = vmatpush1.bf16.msra.mxu0 0
    %1918 = vmatprep.subr.bf16.mxu0 0
    %1919 = vmatpush1.bf16.msra.mxu0 0
    %1920 = vmatprep.mubr.bf16.mxu0 0
    %1921 = vmatmul.mubr.bf16.gmra.mrb[0].mxu0 %v1886
    %v1922 = vpop.f32.mrb[0].mxu0
    %v1923 = vadd.f32 %v1409, %v1922
    %v1924 = vpop.f32.mrb[0].mxu0
    %v1925 = vadd.f32 %v1413, %v1924
    %v1926 = vpop.f32.mrb[0].mxu0
    %v1927 = vpop.f32.mrb[0].mxu0
    %1928 = vdwg.mxu0
    %1929 = vmatprep.subr.bf16.mxu0 0
    %1930 = vmatpush1.bf16.msra.mxu0 %v1503
    %1931 = vmatprep.subr.bf16.mxu0 0
    %1932 = vmatpush1.bf16.msra.mxu0 %v1506
    %1933 = vmatprep.subr.bf16.mxu0 0
    %1934 = vmatpush1.bf16.msra.mxu0 %v1509
    %1935 = vmatprep.subr.bf16.mxu0 0
    %1936 = vmatpush1.bf16.msra.mxu0 %v1512
    %1937 = vmatprep.subr.bf16.mxu0 0
    %1938 = vmatpush1.bf16.msra.mxu0 %v1515
    %1939 = vmatprep.subr.bf16.mxu0 0
    %1940 = vmatpush1.bf16.msra.mxu0 %v1518
    %1941 = vmatprep.subr.bf16.mxu0 0
    %1942 = vmatpush1.bf16.msra.mxu0 %v1521
    %1943 = vmatprep.subr.bf16.mxu0 0
    %1944 = vmatpush1.bf16.msra.mxu0 %v1524
    %1945 = vmatprep.subr.bf16.mxu0 0
    %1946 = vmatpush1.bf16.msra.mxu0 0
    %1947 = vmatprep.subr.bf16.mxu0 0
    %1948 = vmatpush1.bf16.msra.mxu0 0
    %1949 = vmatprep.subr.bf16.mxu0 0
    %1950 = vmatpush1.bf16.msra.mxu0 0
    %1951 = vmatprep.subr.bf16.mxu0 0
    %1952 = vmatpush1.bf16.msra.mxu0 0
    %1953 = vmatprep.subr.bf16.mxu0 0
    %1954 = vmatpush1.bf16.msra.mxu0 0
    %1955 = vmatprep.subr.bf16.mxu0 0
    %1956 = vmatpush1.bf16.msra.mxu0 0
    %1957 = vmatprep.subr.bf16.mxu0 0
    %1958 = vmatpush1.bf16.msra.mxu0 0
    %1959 = vmatprep.subr.bf16.mxu0 0
    %1960 = vmatpush1.bf16.msra.mxu0 0
    %1961 = vmatprep.mubr.bf16.mxu0 0
    %1962 = vmatmul.mubr.bf16.gmra.mrb[0].mxu0 %v1886
    %v1963 = vpop.f32.mrb[0].mxu0
    %v1964 = vadd.f32 %v1417, %v1963
    %v1965 = vpop.f32.mrb[0].mxu0
    %v1966 = vpop.f32.mrb[0].mxu0
    %v1967 = vpop.f32.mrb[0].mxu0
    %1968 = vdwg.mxu0
    %v1970 = vrot.slane %v1923, 2
    %v1972 = vadd.f32 %v1402, %v1970
    %v1973 = vxor.u32 %v1972, 2147483648
    %v1974 = vmul.f32 %v1973, 1.442695
    %v1975 = vpow.pop %v1974
    %v1976 = vadd.f32 %v1975, 1.0
    %v1977 = vrcp.pop %v1976
    %v1978 = vmul.f32 1.0, %v1977
    %v1980 = vrot.slane %v1925, 2
    %v1982 = vadd.f32 %v1403, %v1980
    %v1983 = vxor.u32 %v1982, 2147483648
    %v1984 = vmul.f32 %v1983, 1.442695
    %v1985 = vpow.pop %v1984
    %v1986 = vadd.f32 %v1985, 1.0
    %v1987 = vrcp.pop %v1986
    %v1988 = vmul.f32 1.0, %v1987
    %v1990 = vrot.slane %v1964, 2
    %v1992 = vmul.f32 %v1978, %v1990
    %v1993 = vadd.f32 %v1404, %v1992
    %v1994 = vtanh.pop %v1993
    %v1995 = vsub.f32 1.0, %v1988
    %v1996 = vmul.f32 %v1995, %v1994
    %v1998 = vrot.slane %v1883, 6
    %v2000 = vmul.f32 %v1988, %v1998
    %v2001 = vadd.f32 %v1996, %v2000
    %v2002 = vpack.c.bf16 %v2001, %v2001
    %v2003 = vld [vmem:[%s7] sm:$0xf]
    %v2004 = vld [vmem:[%s7 + $0x4] sm:$0xf]
    %v2005 = vld [vmem:[%s7 + $0x8] sm:$0xf]
    %v2006 = vld [vmem:[%s7 + $0xc] sm:$0xf]
    %v2007 = vld [vmem:[%s7 + $0x10] sm:$0xf]
    %v2008 = vld [vmem:[%s7 + $0x14] sm:$0xf]
    %v2009 = vld [vmem:[%s7 + $0x18] sm:$0xf]
    %v2010 = vld [vmem:[%s7 + $0x1c] sm:$0xf]
    %v2011 = vld [vmem:[%s7 + $0x20] sm:$0xf]
    %v2012 = vld [vmem:[%s7 + $0x24] sm:$0xf]
    %v2013 = vld [vmem:[%s7 + $0x28] sm:$0xf]
    %v2014 = vld [vmem:[%s7 + $0x2c] sm:$0xf]
    %v2015 = vld [vmem:[%s7 + $0x30] sm:$0xf]
    %v2016 = vld [vmem:[%s7 + $0x34] sm:$0xf]
    %v2017 = vld [vmem:[%s7 + $0x38] sm:$0xf]
    %v2018 = vld [vmem:[%s7 + $0x3c] sm:$0xf]
    %v2019 = vld [vmem:[#allocation7] sm:$0x1]
    %v2021 = vlaneseq
    %v2022 = vshrl.u32 %v2021, 7
    %v2023 = vsub.s32 0, %v2022
    %v2024 = vrot.slane %v2019, %v2023
    %v2027 = vrot.slane %v2002, 3
    %v2045 = vunpack.c.l.b16 %v2003
    %v2046 = vunpack.c.l.b16 %v2004
    %v2047 = vunpack.c.l.b16 %v2005
    %v2048 = vunpack.c.l.b16 %v2006
    %v2049 = vunpack.c.l.b16 %v2007
    %v2050 = vunpack.c.l.b16 %v2008
    %v2051 = vunpack.c.l.b16 %v2009
    %v2052 = vunpack.c.l.b16 %v2010
    %v2053 = vunpack.c.l.b16 %v2011
    %v2054 = vunpack.c.l.b16 %v2012
    %v2055 = vunpack.c.l.b16 %v2013
    %v2056 = vunpack.c.l.b16 %v2014
    %v2057 = vunpack.c.l.b16 %v2015
    %v2058 = vunpack.c.l.b16 %v2016
    %v2059 = vunpack.c.l.b16 %v2017
    %v2060 = vunpack.c.l.b16 %v2018
    %v2061 = vpack.c.b16 %v2046, %v2045
    %v2062 = vpack.c.b16 %v2048, %v2047
    %v2063 = vpack.c.b16 %v2050, %v2049
    %v2064 = vpack.c.b16 %v2052, %v2051
    %v2065 = vpack.c.b16 %v2054, %v2053
    %v2066 = vpack.c.b16 %v2056, %v2055
    %v2067 = vpack.c.b16 %v2058, %v2057
    %v2068 = vpack.c.b16 %v2060, %v2059
    %2077 = vmatprep.subr.bf16.mxu0 0
    %2078 = vmatpush1.bf16.msra.mxu0 %v2061
    %2079 = vmatprep.subr.bf16.mxu0 0
    %2080 = vmatpush1.bf16.msra.mxu0 %v2062
    %2081 = vmatprep.subr.bf16.mxu0 0
    %2082 = vmatpush1.bf16.msra.mxu0 %v2063
    %2083 = vmatprep.subr.bf16.mxu0 0
    %2084 = vmatpush1.bf16.msra.mxu0 %v2064
    %2085 = vmatprep.subr.bf16.mxu0 0
    %2086 = vmatpush1.bf16.msra.mxu0 %v2065
    %2087 = vmatprep.subr.bf16.mxu0 0
    %2088 = vmatpush1.bf16.msra.mxu0 %v2066
    %2089 = vmatprep.subr.bf16.mxu0 0
    %2090 = vmatpush1.bf16.msra.mxu0 %v2067
    %2091 = vmatprep.subr.bf16.mxu0 0
    %2092 = vmatpush1.bf16.msra.mxu0 %v2068
    %2093 = vmatprep.subr.bf16.mxu0 0
    %2094 = vmatpush1.bf16.msra.mxu0 0
    %2095 = vmatprep.subr.bf16.mxu0 0
    %2096 = vmatpush1.bf16.msra.mxu0 0
    %2097 = vmatprep.subr.bf16.mxu0 0
    %2098 = vmatpush1.bf16.msra.mxu0 0
    %2099 = vmatprep.subr.bf16.mxu0 0
    %2100 = vmatpush1.bf16.msra.mxu0 0
    %2101 = vmatprep.subr.bf16.mxu0 0
    %2102 = vmatpush1.bf16.msra.mxu0 0
    %2103 = vmatprep.subr.bf16.mxu0 0
    %2104 = vmatpush1.bf16.msra.mxu0 0
    %2105 = vmatprep.subr.bf16.mxu0 0
    %2106 = vmatpush1.bf16.msra.mxu0 0
    %2107 = vmatprep.subr.bf16.mxu0 0
    %2108 = vmatpush1.bf16.msra.mxu0 0
    %2109 = vmatprep.mubr.bf16.mxu0 0
    %2110 = vmatmul.mubr.bf16.gmra.mrb[0].mxu0 %v2027
    %v2111 = vpop.f32.mrb[0].mxu0
    %v2112 = vadd.f32 %v2024, %v2111
    %v2113 = vpop.f32.mrb[0].mxu0
    %v2114 = vpop.f32.mrb[0].mxu0
    %v2115 = vpop.f32.mrb[0].mxu0
    %2116 = vdwg.mxu0
    %v2117 = vmax.f32 %v2112, 0.0
    %v2118 = vpack.c.bf16 %v2117, %v2117
    %v2119 = vld [vmem:[%s9] sm:$0xf]
    %v2120 = vld [vmem:[%s9 + $0x4] sm:$0xf]
    %v2121 = vld [vmem:[%s9 + $0x8] sm:$0xf]
    %v2122 = vld [vmem:[%s9 + $0xc] sm:$0xf]
    %v2123 = vld [vmem:[%s9 + $0x10] sm:$0xf]
    %v2124 = vld [vmem:[%s9 + $0x14] sm:$0xf]
    %v2125 = vld [vmem:[%s9 + $0x18] sm:$0xf]
    %v2126 = vld [vmem:[%s9 + $0x1c] sm:$0xf]
    %v2127 = vld [vmem:[#allocation8] sm:$0x1]
    %v2129 = vlaneseq
    %v2130 = vshrl.u32 %v2129, 7
    %v2131 = vsub.s32 0, %v2130
    %v2132 = vrot.slane %v2127, %v2131
    %v2142 = vunpack.c.l.b16 %v2119
    %v2143 = vunpack.c.l.b16 %v2120
    %v2144 = vunpack.c.l.b16 %v2121
    %v2145 = vunpack.c.l.b16 %v2122
    %v2146 = vunpack.c.l.b16 %v2123
    %v2147 = vunpack.c.l.b16 %v2124
    %v2148 = vunpack.c.l.b16 %v2125
    %v2149 = vunpack.c.l.b16 %v2126
    %v2150 = vpack.c.b16 %v2143, %v2142
    %v2151 = vpack.c.b16 %v2145, %v2144
    %v2152 = vpack.c.b16 %v2147, %v2146
    %v2153 = vpack.c.b16 %v2149, %v2148
    %vm2158 = vcmask 523264
    %v2160 = vsel %vm2158, %v2118, 0
    %2162 = vmatprep.subr.bf16.mxu0 0
    %2163 = vmatpush1.bf16.msra.mxu0 %v2150
    %2164 = vmatprep.subr.bf16.mxu0 0
    %2165 = vmatpush1.bf16.msra.mxu0 %v2151
    %2166 = vmatprep.subr.bf16.mxu0 0
    %2167 = vmatpush1.bf16.msra.mxu0 %v2152
    %2168 = vmatprep.subr.bf16.mxu0 0
    %2169 = vmatpush1.bf16.msra.mxu0 %v2153
    %2170 = vmatprep.subr.bf16.mxu0 0
    %2171 = vmatpush1.bf16.msra.mxu0 0
    %2172 = vmatprep.subr.bf16.mxu0 0
    %2173 = vmatpush1.bf16.msra.mxu0 0
    %2174 = vmatprep.subr.bf16.mxu0 0
    %2175 = vmatpush1.bf16.msra.mxu0 0
    %2176 = vmatprep.subr.bf16.mxu0 0
    %2177 = vmatpush1.bf16.msra.mxu0 0
    %2178 = vmatprep.subr.bf16.mxu0 0
    %2179 = vmatpush1.bf16.msra.mxu0 0
    %2180 = vmatprep.subr.bf16.mxu0 0
    %2181 = vmatpush1.bf16.msra.mxu0 0
    %2182 = vmatprep.subr.bf16.mxu0 0
    %2183 = vmatpush1.bf16.msra.mxu0 0
    %2184 = vmatprep.subr.bf16.mxu0 0
    %2185 = vmatpush1.bf16.msra.mxu0 0
    %2186 = vmatprep.subr.bf16.mxu0 0
    %2187 = vmatpush1.bf16.msra.mxu0 0
    %2188 = vmatprep.subr.bf16.mxu0 0
    %2189 = vmatpush1.bf16.msra.mxu0 0
    %2190 = vmatprep.subr.bf16.mxu0 0
    %2191 = vmatpush1.bf16.msra.mxu0 0
    %2192 = vmatprep.subr.bf16.mxu0 0
    %2193 = vmatpush1.bf16.msra.mxu0 0
    %2194 = vmatprep.mubr.bf16.mxu0 0
    %2195 = vmatmul.mubr.bf16.gmra.mrb[0].mxu0 %v2160
    %v2196 = vpop.f32.mrb[0].mxu0
    %v2197 = vadd.f32 %v2132, %v2196
    %v2198 = vpop.f32.mrb[0].mxu0
    %v2199 = vpop.f32.mrb[0].mxu0
    %v2200 = vpop.f32.mrb[0].mxu0
    %2201 = vdwg.mxu0
    %2202 = vst [vmem:[#allocation10] sm:$0x3] %v2197
    // Predicated region
    $region62: #{cnn_predictor_forward.1} parent=1 // pred_check
      _
    $region63: #{cnn_predictor_forward.1} parent=1 // pred_check_branch
      %2204 = sbr.rel (0) target = $region65
    $region64: #{cnn_predictor_forward.1} parent=1 // pred_region
      %s2206 = ssub.s32 32, 32
      %2207 = vsyncadd [#allocation4], %s2206
      %s2209 = sshll.u32 [#allocation10], 4
      %s2210 = int_to_ptr.vmem [resolvable:$true] %s2209
      %2212 = dma.vmem_to_hbm [thread:$0]  %s2210, 32, %s11, [#allocation4]
    $region65: #{cnn_predictor_forward.1} parent=1 // pred_fallthru
      _
    // Predicated region
    $region66: #{cnn_predictor_forward.1} parent=1 // pred_check
      _
    $region67: #{cnn_predictor_forward.1} parent=1 // pred_check_branch
      %2214 = sbr.rel (0) target = $region69
    $region68: #{cnn_predictor_forward.1} parent=1 // pred_region
      %2215 = dma.done [#allocation4], 32
    $region69: #{cnn_predictor_forward.1} parent=1 // pred_fallthru
      _
    %2216 = vsyncpa [#allocation3], 1
    %2217 = vsyncpa [#allocation6], 1
    %2218 = vsyncpa [#allocation9], 1
    %2219 = vsyncpa [#allocation4], 1

</llo_original>
